<compile_context>
chip_gen: v7x
topology: tpu7x:2x2x1
jax: 0.10.0
libtpu: 0.0.40
codegen_flags: <defaults>
</compile_context>

<pallas_src>
import functools

import jax
import jax.numpy as jnp
from jax.experimental import pallas as pl
from jax.experimental.pallas import tpu as pltpu


def _preact_conv_kernel(x_ref, scale_ref, shift_ref, w_ref, b_ref, o_ref,
                        pad_ref, col_ref, *, K, P, TR, Wo):
    """Fused folded-BN + ReLU + stride-1 conv for one (image, row-block) step.

    x_ref:     (1, H, W, Cin)        NHWC input block (C on lanes); same block for all r
    scale_ref: (1, 1, Cin)           folded BN scale (f32)
    shift_ref: (1, 1, Cin)           folded BN shift (f32)
    w_ref:     (K*K*Cin, Cout)       conv taps as one bf16 matmul operand (kh,kw,ci ordering)
    b_ref:     (1, Cout)             conv bias (f32)
    o_ref:     (1, Cout, TR*Wo)      lane-dense NCHW output block for output rows [r*TR, r*TR+TR)
    pad_ref:   VMEM (H+2P, W+2P, Cin) f32 scratch: zero-padded post-BN/ReLU activations
    col_ref:   VMEM (TR*Wo, K*K*Cin)  bf16 scratch: im2col patch for this row block
    """
    H = x_ref.shape[1]
    W = x_ref.shape[2]
    Cin = x_ref.shape[3]
    Hp = H + 2 * P
    Wp = W + 2 * P

    r = pl.program_id(1)

    # ---- once per image (row-block 0): BN + ReLU, write padded activations ----
    @pl.when(r == 0)
    def _build_padded_activation():
        x = x_ref[0].astype(jnp.float32)                                 # (H, W, Cin)
        act = jnp.maximum(
            x * scale_ref[...].astype(jnp.float32)
            + shift_ref[...].astype(jnp.float32), 0.0)
        if P > 0:
            # Zero only the P-wide border strips; the interior is overwritten below.
            pad_ref[0:P, :, :] = jnp.zeros((P, Wp, Cin), pad_ref.dtype)
            pad_ref[Hp - P:Hp, :, :] = jnp.zeros((P, Wp, Cin), pad_ref.dtype)
            pad_ref[P:P + H, 0:P, :] = jnp.zeros((H, P, Cin), pad_ref.dtype)
            pad_ref[P:P + H, Wp - P:Wp, :] = jnp.zeros((H, P, Cin), pad_ref.dtype)
        pad_ref[P:P + H, P:P + W, :] = act.astype(pad_ref.dtype)

    # ---- every row block: build im2col patch, one bf16 MXU matmul ----
    row0 = pl.multiple_of(r * TR, TR)
    for kh in range(K):
        for kw in range(K):
            t = kh * K + kw
            win = pad_ref[pl.ds(row0 + kh, TR), kw:kw + Wo, :]           # (TR, Wo, Cin) f32
            col_ref[:, t * Cin:(t + 1) * Cin] = (
                win.reshape(TR * Wo, Cin).astype(col_ref.dtype))

    acc = jnp.dot(col_ref[...], w_ref[...],
                  preferred_element_type=jnp.float32)                    # (TR*Wo, Cout) f32
    acc = acc + b_ref[...].astype(jnp.float32)
    # Transpose to (Cout, TR*Wo): lane-dense NCHW store, no wrapper output transpose.
    o_ref[0] = acc.T.astype(o_ref.dtype)


def _pick_row_block(Ho, Wo, Cout):
    """Largest divisor TR of Ho such that the f32 accumulator stays small, the
    flattened output lane extent TR*Wo is 128-aligned, and there are >=2 row
    blocks (pipeline overlap).  Falls back to the whole image (always legal)."""
    acc_budget = 96 * 1024  # bytes for the (TR*Wo, Cout) f32 accumulator
    best = Ho
    for tr in range(1, Ho + 1):
        if Ho % tr:
            continue
        lane_dense = (tr * Wo) % 128 == 0
        fits = tr * Wo * Cout * 4 <= acc_budget
        if lane_dense and fits and (Ho // tr) >= 2:
            best = tr
    return best


def preact_conv(x, gamma, beta, running_mean, running_var, w, b, *,
                eps=1e-5, padding=1):
    """PreActivConv forward: BatchNorm2d(eval) -> ReLU -> Conv2d(kernel, padding), stride 1.

    x: (N, Cin, H, W) NCHW; w: (Cout, Cin, K, K) OIHW; b: (Cout,).  Returns NCHW.
    """
    N, Cin, H, W = x.shape
    Cout, Cin_w, K, K2 = w.shape
    assert K == K2 and Cin_w == Cin
    P = int(padding)
    Ho = H + 2 * P - K + 1
    Wo = W + 2 * P - K + 1
    assert Ho > 0 and Wo > 0

    # Fold BN into per-channel scale + shift (eval-mode running stats).
    scale1d = (gamma / jnp.sqrt(running_var + eps)).astype(jnp.float32)
    shift1d = (beta - running_mean * scale1d).astype(jnp.float32)
    scale = scale1d.reshape(1, 1, Cin)
    shift = shift1d.reshape(1, 1, Cin)

    # Weights as a single bf16 (K*K*Cin, Cout) matmul operand, im2col (kh,kw,ci) order.
    w_taps = (jnp.transpose(w, (2, 3, 1, 0))
              .reshape(K * K * Cin, Cout).astype(jnp.bfloat16))
    b2 = b.reshape(1, Cout).astype(jnp.float32)

    # Lane-dense NHWC inside the kernel (channels on lanes).  The input
    # NCHW->NHWC transpose stays in the wrapper (one extra HBM pass over x);
    # the output path needs no transpose at all (kernel writes NCHW directly).
    x_nhwc = jnp.transpose(x, (0, 2, 3, 1))                              # (N, H, W, Cin)

    TR = _pick_row_block(Ho, Wo, Cout)
    R = Ho // TR

    # Generation-aware VMEM limit (v7x has 64 MiB vs 128 MiB on v5e/v6e).
    try:
        info = pltpu.get_tpu_info()
    except Exception:
        info = None
    vmem_cap = getattr(info, "vmem_capacity_bytes", None) or (64 * 1024 * 1024)
    vmem_limit = int(min(vmem_cap * 3 // 4, 112 * 1024 * 1024))

    kernel = functools.partial(_preact_conv_kernel, K=K, P=P, TR=TR, Wo=Wo)
    out_flat = pl.pallas_call(
        kernel,
        out_shape=jax.ShapeDtypeStruct((N, Cout, Ho * Wo), x.dtype),
        grid=(N, R),
        in_specs=[
            pl.BlockSpec((1, H, W, Cin), lambda n, r: (n, 0, 0, 0)),
            pl.BlockSpec((1, 1, Cin), lambda n, r: (0, 0, 0)),
            pl.BlockSpec((1, 1, Cin), lambda n, r: (0, 0, 0)),
            pl.BlockSpec((K * K * Cin, Cout), lambda n, r: (0, 0)),
            pl.BlockSpec((1, Cout), lambda n, r: (0, 0)),
        ],
        out_specs=pl.BlockSpec((1, Cout, TR * Wo), lambda n, r: (n, 0, r)),
        scratch_shapes=[
            pltpu.VMEM((H + 2 * P, W + 2 * P, Cin), jnp.float32),
            pltpu.VMEM((TR * Wo, K * K * Cin), jnp.bfloat16),
        ],
        compiler_params=pltpu.CompilerParams(
            # Batch axis parallel (v7x megacore); row axis arbitrary because the
            # padded-activation scratch is built at r == 0 and reused for r > 0.
            dimension_semantics=("parallel", "arbitrary"),
            vmem_limit_bytes=vmem_limit,
        ),
    )(x_nhwc, scale, shift, w_taps, b2)

    return out_flat.reshape(N, Cout, Ho, Wo)                             # free reshape, NCHW


def _reference_preact_conv(x, gamma, beta, running_mean, running_var, w, b,
                           eps, padding):
    # Pure-JAX reference: eval-mode BN -> ReLU -> Conv2d (cross-correlation, like PyTorch).
    scale = gamma / jnp.sqrt(running_var + eps)
    shift = beta - running_mean * scale
    a = jnp.maximum(x * scale[None, :, None, None] + shift[None, :, None, None], 0.0)
    y = jax.lax.conv_general_dilated(
        a, w, window_strides=(1, 1),
        padding=[(padding, padding), (padding, padding)],
        dimension_numbers=("NCHW", "OIHW", "NCHW"),
        precision=jax.lax.Precision.HIGHEST)
    return y + b[None, :, None, None]


if __name__ == "__main__":
    key = jax.random.PRNGKey(0)
    kx, kw, kb, kg, kbt, km, kv = jax.random.split(key, 7)

    N, Cin, H, W = 2, 4, 16, 16
    Cout, K, P = 8, 3, 1

    x = jax.random.normal(kx, (N, Cin, H, W), jnp.float32)
    w = jax.random.normal(kw, (Cout, Cin, K, K), jnp.float32) * 0.1
    b = jax.random.normal(kb, (Cout,), jnp.float32) * 0.1
    gamma = 1.0 + 0.1 * jax.random.normal(kg, (Cin,), jnp.float32)
    beta = 0.1 * jax.random.normal(kbt, (Cin,), jnp.float32)
    running_mean = 0.1 * jax.random.normal(km, (Cin,), jnp.float32)
    running_var = jax.random.uniform(kv, (Cin,), jnp.float32, minval=0.5, maxval=1.5)

    y = preact_conv(x, gamma, beta, running_mean, running_var, w, b,
                    eps=1e-5, padding=P)
    y = jax.block_until_ready(y)

    y_ref = _reference_preact_conv(x, gamma, beta, running_mean, running_var, w, b,
                                   1e-5, P)
    assert y.shape == (N, Cout, H, W), y.shape
    # bf16 MXU operands -> slightly loosened tolerance vs the f32 reference.
    assert jnp.allclose(y, y_ref, atol=1e-2, rtol=1e-2), \
        float(jnp.max(jnp.abs(y - y_ref)))

    print("KERNEL_OK")
</pallas_src>

<mosaic_0001>
module attributes {stable_mosaic.version = 11 : i64} {
  func.func @_preact_conv_kernel(%arg0: i32, %arg1: i32, %arg2: memref<1x16x16x4xf32, #tpu.memory_space<vmem>>, %arg3: memref<1x1x4xf32, #tpu.memory_space<vmem>>, %arg4: memref<1x1x4xf32, #tpu.memory_space<vmem>>, %arg5: memref<36x8xbf16, #tpu.memory_space<vmem>>, %arg6: memref<1x8xf32, #tpu.memory_space<vmem>>, %arg7: memref<1x8x128xf32, #tpu.memory_space<vmem>>, %arg8: memref<18x18x4xf32, #tpu.memory_space<vmem>>, %arg9: memref<128x36xbf16, #tpu.memory_space<vmem>>) attributes {dimension_semantics = [#tpu.dimension_semantics<parallel>, #tpu.dimension_semantics<arbitrary>], iteration_bounds = array<i64: 2, 2>, scalar_prefetch = 0 : i64, scratch_operands = 2 : i64, tpu.core_type = #tpu.core_type<tc>, window_params = [{transform_indices = @transform_0, window_bounds = array<i64: 1, 16, 16, 4>}, {pipeline_mode = #tpu.pipeline_mode<synchronous>, transform_indices = @transform_1, window_bounds = array<i64: 1, 1, 4>}, {pipeline_mode = #tpu.pipeline_mode<synchronous>, transform_indices = @transform_2, window_bounds = array<i64: 1, 1, 4>}, {pipeline_mode = #tpu.pipeline_mode<synchronous>, transform_indices = @transform_3, window_bounds = array<i64: 36, 8>}, {pipeline_mode = #tpu.pipeline_mode<synchronous>, transform_indices = @transform_4, window_bounds = array<i64: 1, 8>}, {transform_indices = @transform_5, window_bounds = array<i64: 1, 8, 128>}]} {
    %c0_i32 = arith.constant 0 : i32
    %0 = arith.cmpi eq, %arg1, %c0_i32 : i32
    %1 = arith.extui %0 : i1 to i32
    %c0_i32_0 = arith.constant 0 : i32
    %2 = arith.cmpi ne, %1, %c0_i32_0 : i32
    scf.if %2 {
      %c0_42 = arith.constant 0 : index
      %c0_43 = arith.constant 0 : index
      %c0_44 = arith.constant 0 : index
      %c0_45 = arith.constant 0 : index
      %69 = vector.load %arg2[%c0_42, %c0_43, %c0_44, %c0_45] : memref<1x16x16x4xf32, #tpu.memory_space<vmem>>, vector<1x16x16x4xf32>
      %70 = vector.shape_cast %69 : vector<1x16x16x4xf32> to vector<16x16x4xf32>
      %c0_46 = arith.constant 0 : index
      %c0_47 = arith.constant 0 : index
      %c0_48 = arith.constant 0 : index
      %71 = vector.load %arg3[%c0_46, %c0_47, %c0_48] : memref<1x1x4xf32, #tpu.memory_space<vmem>>, vector<1x1x4xf32>
      %72 = vector.broadcast %71 : vector<1x1x4xf32> to vector<16x16x4xf32>
      %73 = arith.mulf %70, %72 : vector<16x16x4xf32>
      %c0_49 = arith.constant 0 : index
      %c0_50 = arith.constant 0 : index
      %c0_51 = arith.constant 0 : index
      %74 = vector.load %arg4[%c0_49, %c0_50, %c0_51] : memref<1x1x4xf32, #tpu.memory_space<vmem>>, vector<1x1x4xf32>
      %75 = vector.broadcast %74 : vector<1x1x4xf32> to vector<16x16x4xf32>
      %76 = arith.addf %73, %75 : vector<16x16x4xf32>
      %cst_52 = arith.constant 0.000000e+00 : f32
      %77 = vector.broadcast %cst_52 : f32 to vector<16x16x4xf32>
      %78 = arith.maximumf %76, %77 : vector<16x16x4xf32>
      %cst_53 = arith.constant 0.000000e+00 : f32
      %79 = vector.broadcast %cst_53 : f32 to vector<1x18x4xf32>
      %c0_54 = arith.constant 0 : index
      %c0_55 = arith.constant 0 : index
      %c0_56 = arith.constant 0 : index
      %80 = vector.load %arg8[%c0_54, %c0_55, %c0_56] : memref<18x18x4xf32, #tpu.memory_space<vmem>>, vector<1x18x4xf32>
      tpu.vector_store %arg8[%c0_54, %c0_55, %c0_56], %79 {strides = array<i32>} : memref<18x18x4xf32, #tpu.memory_space<vmem>>, vector<1x18x4xf32>,
      %cst_57 = arith.constant 0.000000e+00 : f32
      %81 = vector.broadcast %cst_57 : f32 to vector<1x18x4xf32>
      %c17 = arith.constant 17 : index
      %c0_58 = arith.constant 0 : index
      %c0_59 = arith.constant 0 : index
      %82 = vector.load %arg8[%c17, %c0_58, %c0_59] : memref<18x18x4xf32, #tpu.memory_space<vmem>>, vector<1x18x4xf32>
      tpu.vector_store %arg8[%c17, %c0_58, %c0_59], %81 {strides = array<i32>} : memref<18x18x4xf32, #tpu.memory_space<vmem>>, vector<1x18x4xf32>,
      %cst_60 = arith.constant 0.000000e+00 : f32
      %83 = vector.broadcast %cst_60 : f32 to vector<16x1x4xf32>
      %c1_61 = arith.constant 1 : index
      %c0_62 = arith.constant 0 : index
      %c0_63 = arith.constant 0 : index
      %84 = vector.load %arg8[%c1_61, %c0_62, %c0_63] : memref<18x18x4xf32, #tpu.memory_space<vmem>>, vector<16x1x4xf32>
      tpu.vector_store %arg8[%c1_61, %c0_62, %c0_63], %83 {strides = array<i32>} : memref<18x18x4xf32, #tpu.memory_space<vmem>>, vector<16x1x4xf32>,
      %cst_64 = arith.constant 0.000000e+00 : f32
      %85 = vector.broadcast %cst_64 : f32 to vector<16x1x4xf32>
      %c1_65 = arith.constant 1 : index
      %c17_66 = arith.constant 17 : index
      %c0_67 = arith.constant 0 : index
      %86 = vector.load %arg8[%c1_65, %c17_66, %c0_67] : memref<18x18x4xf32, #tpu.memory_space<vmem>>, vector<16x1x4xf32>
      tpu.vector_store %arg8[%c1_65, %c17_66, %c0_67], %85 {strides = array<i32>} : memref<18x18x4xf32, #tpu.memory_space<vmem>>, vector<16x1x4xf32>,
      %c1_68 = arith.constant 1 : index
      %c1_69 = arith.constant 1 : index
      %c0_70 = arith.constant 0 : index
      %87 = vector.load %arg8[%c1_68, %c1_69, %c0_70] : memref<18x18x4xf32, #tpu.memory_space<vmem>>, vector<16x16x4xf32>
      tpu.vector_store %arg8[%c1_68, %c1_69, %c0_70], %78 {strides = array<i32>} : memref<18x18x4xf32, #tpu.memory_space<vmem>>, vector<16x16x4xf32>,
    } else {
    }
    %c8_i32 = arith.constant 8 : i32
    %3 = arith.muli %arg1, %c8_i32 : i32
    %4 = tpu.assume_multiple %3, 8 : i32
    %c0_i32_1 = arith.constant 0 : i32
    %5 = arith.addi %4, %c0_i32_1 : i32
    %6 = arith.index_cast %5 : i32 to index
    %c0 = arith.constant 0 : index
    %c0_2 = arith.constant 0 : index
    %7 = vector.load %arg8[%6, %c0, %c0_2] : memref<18x18x4xf32, #tpu.memory_space<vmem>>, vector<8x16x4xf32>
    %8 = vector.shape_cast %7 : vector<8x16x4xf32> to vector<128x4xf32>
    %9 = arith.truncf %8 : vector<128x4xf32> to vector<128x4xbf16>
    %c0_3 = arith.constant 0 : index
    %c0_4 = arith.constant 0 : index
    %10 = vector.load %arg9[%c0_3, %c0_4] : memref<128x36xbf16, #tpu.memory_space<vmem>>, vector<128x4xbf16>
    tpu.vector_store %arg9[%c0_3, %c0_4], %9 {strides = array<i32>} : memref<128x36xbf16, #tpu.memory_space<vmem>>, vector<128x4xbf16>,
    %c0_i32_5 = arith.constant 0 : i32
    %11 = arith.addi %4, %c0_i32_5 : i32
    %12 = arith.index_cast %11 : i32 to index
    %c1 = arith.constant 1 : index
    %c0_6 = arith.constant 0 : index
    %13 = vector.load %arg8[%12, %c1, %c0_6] : memref<18x18x4xf32, #tpu.memory_space<vmem>>, vector<8x16x4xf32>
    %14 = vector.shape_cast %13 : vector<8x16x4xf32> to vector<128x4xf32>
    %15 = arith.truncf %14 : vector<128x4xf32> to vector<128x4xbf16>
    %c0_7 = arith.constant 0 : index
    %c4 = arith.constant 4 : index
    %16 = vector.load %arg9[%c0_7, %c4] : memref<128x36xbf16, #tpu.memory_space<vmem>>, vector<128x4xbf16>
    tpu.vector_store %arg9[%c0_7, %c4], %15 {strides = array<i32>} : memref<128x36xbf16, #tpu.memory_space<vmem>>, vector<128x4xbf16>,
    %c0_i32_8 = arith.constant 0 : i32
    %17 = arith.addi %4, %c0_i32_8 : i32
    %18 = arith.index_cast %17 : i32 to index
    %c2 = arith.constant 2 : index
    %c0_9 = arith.constant 0 : index
    %19 = vector.load %arg8[%18, %c2, %c0_9] : memref<18x18x4xf32, #tpu.memory_space<vmem>>, vector<8x16x4xf32>
    %20 = vector.shape_cast %19 : vector<8x16x4xf32> to vector<128x4xf32>
    %21 = arith.truncf %20 : vector<128x4xf32> to vector<128x4xbf16>
    %c0_10 = arith.constant 0 : index
    %c8 = arith.constant 8 : index
    %22 = vector.load %arg9[%c0_10, %c8] : memref<128x36xbf16, #tpu.memory_space<vmem>>, vector<128x4xbf16>
    tpu.vector_store %arg9[%c0_10, %c8], %21 {strides = array<i32>} : memref<128x36xbf16, #tpu.memory_space<vmem>>, vector<128x4xbf16>,
    %c1_i32 = arith.constant 1 : i32
    %23 = arith.addi %4, %c1_i32 : i32
    %24 = arith.index_cast %23 : i32 to index
    %c0_11 = arith.constant 0 : index
    %c0_12 = arith.constant 0 : index
    %25 = vector.load %arg8[%24, %c0_11, %c0_12] : memref<18x18x4xf32, #tpu.memory_space<vmem>>, vector<8x16x4xf32>
    %26 = vector.shape_cast %25 : vector<8x16x4xf32> to vector<128x4xf32>
    %27 = arith.truncf %26 : vector<128x4xf32> to vector<128x4xbf16>
    %c0_13 = arith.constant 0 : index
    %c12 = arith.constant 12 : index
    %28 = vector.load %arg9[%c0_13, %c12] : memref<128x36xbf16, #tpu.memory_space<vmem>>, vector<128x4xbf16>
    tpu.vector_store %arg9[%c0_13, %c12], %27 {strides = array<i32>} : memref<128x36xbf16, #tpu.memory_space<vmem>>, vector<128x4xbf16>,
    %c1_i32_14 = arith.constant 1 : i32
    %29 = arith.addi %4, %c1_i32_14 : i32
    %30 = arith.index_cast %29 : i32 to index
    %c1_15 = arith.constant 1 : index
    %c0_16 = arith.constant 0 : index
    %31 = vector.load %arg8[%30, %c1_15, %c0_16] : memref<18x18x4xf32, #tpu.memory_space<vmem>>, vector<8x16x4xf32>
    %32 = vector.shape_cast %31 : vector<8x16x4xf32> to vector<128x4xf32>
    %33 = arith.truncf %32 : vector<128x4xf32> to vector<128x4xbf16>
    %c0_17 = arith.constant 0 : index
    %c16 = arith.constant 16 : index
    %34 = vector.load %arg9[%c0_17, %c16] : memref<128x36xbf16, #tpu.memory_space<vmem>>, vector<128x4xbf16>
    tpu.vector_store %arg9[%c0_17, %c16], %33 {strides = array<i32>} : memref<128x36xbf16, #tpu.memory_space<vmem>>, vector<128x4xbf16>,
    %c1_i32_18 = arith.constant 1 : i32
    %35 = arith.addi %4, %c1_i32_18 : i32
    %36 = arith.index_cast %35 : i32 to index
    %c2_19 = arith.constant 2 : index
    %c0_20 = arith.constant 0 : index
    %37 = vector.load %arg8[%36, %c2_19, %c0_20] : memref<18x18x4xf32, #tpu.memory_space<vmem>>, vector<8x16x4xf32>
    %38 = vector.shape_cast %37 : vector<8x16x4xf32> to vector<128x4xf32>
    %39 = arith.truncf %38 : vector<128x4xf32> to vector<128x4xbf16>
    %c0_21 = arith.constant 0 : index
    %c20 = arith.constant 20 : index
    %40 = vector.load %arg9[%c0_21, %c20] : memref<128x36xbf16, #tpu.memory_space<vmem>>, vector<128x4xbf16>
    tpu.vector_store %arg9[%c0_21, %c20], %39 {strides = array<i32>} : memref<128x36xbf16, #tpu.memory_space<vmem>>, vector<128x4xbf16>,
    %c2_i32 = arith.constant 2 : i32
    %41 = arith.addi %4, %c2_i32 : i32
    %42 = arith.index_cast %41 : i32 to index
    %c0_22 = arith.constant 0 : index
    %c0_23 = arith.constant 0 : index
    %43 = vector.load %arg8[%42, %c0_22, %c0_23] : memref<18x18x4xf32, #tpu.memory_space<vmem>>, vector<8x16x4xf32>
    %44 = vector.shape_cast %43 : vector<8x16x4xf32> to vector<128x4xf32>
    %45 = arith.truncf %44 : vector<128x4xf32> to vector<128x4xbf16>
    %c0_24 = arith.constant 0 : index
    %c24 = arith.constant 24 : index
    %46 = vector.load %arg9[%c0_24, %c24] : memref<128x36xbf16, #tpu.memory_space<vmem>>, vector<128x4xbf16>
    tpu.vector_store %arg9[%c0_24, %c24], %45 {strides = array<i32>} : memref<128x36xbf16, #tpu.memory_space<vmem>>, vector<128x4xbf16>,
    %c2_i32_25 = arith.constant 2 : i32
    %47 = arith.addi %4, %c2_i32_25 : i32
    %48 = arith.index_cast %47 : i32 to index
    %c1_26 = arith.constant 1 : index
    %c0_27 = arith.constant 0 : index
    %49 = vector.load %arg8[%48, %c1_26, %c0_27] : memref<18x18x4xf32, #tpu.memory_space<vmem>>, vector<8x16x4xf32>
    %50 = vector.shape_cast %49 : vector<8x16x4xf32> to vector<128x4xf32>
    %51 = arith.truncf %50 : vector<128x4xf32> to vector<128x4xbf16>
    %c0_28 = arith.constant 0 : index
    %c28 = arith.constant 28 : index
    %52 = vector.load %arg9[%c0_28, %c28] : memref<128x36xbf16, #tpu.memory_space<vmem>>, vector<128x4xbf16>
    tpu.vector_store %arg9[%c0_28, %c28], %51 {strides = array<i32>} : memref<128x36xbf16, #tpu.memory_space<vmem>>, vector<128x4xbf16>,
    %c2_i32_29 = arith.constant 2 : i32
    %53 = arith.addi %4, %c2_i32_29 : i32
    %54 = arith.index_cast %53 : i32 to index
    %c2_30 = arith.constant 2 : index
    %c0_31 = arith.constant 0 : index
    %55 = vector.load %arg8[%54, %c2_30, %c0_31] : memref<18x18x4xf32, #tpu.memory_space<vmem>>, vector<8x16x4xf32>
    %56 = vector.shape_cast %55 : vector<8x16x4xf32> to vector<128x4xf32>
    %57 = arith.truncf %56 : vector<128x4xf32> to vector<128x4xbf16>
    %c0_32 = arith.constant 0 : index
    %c32 = arith.constant 32 : index
    %58 = vector.load %arg9[%c0_32, %c32] : memref<128x36xbf16, #tpu.memory_space<vmem>>, vector<128x4xbf16>
    tpu.vector_store %arg9[%c0_32, %c32], %57 {strides = array<i32>} : memref<128x36xbf16, #tpu.memory_space<vmem>>, vector<128x4xbf16>,
    %c0_33 = arith.constant 0 : index
    %c0_34 = arith.constant 0 : index
    %59 = vector.load %arg9[%c0_33, %c0_34] : memref<128x36xbf16, #tpu.memory_space<vmem>>, vector<128x36xbf16>
    %c0_35 = arith.constant 0 : index
    %c0_36 = arith.constant 0 : index
    %60 = vector.load %arg5[%c0_35, %c0_36] : memref<36x8xbf16, #tpu.memory_space<vmem>>, vector<36x8xbf16>
    %cst = arith.constant dense<0.000000e+00> : vector<128x8xf32>
    %61 = tpu.matmul %59, %60, %cst {dimension_numbers = #tpu.dot_dimension_numbers<[1], [0], [0], [1], [0, 0, 1, 1], [], []>} : vector<128x36xbf16>, vector<36x8xbf16>, vector<128x8xf32> -> vector<128x8xf32>
    %c0_37 = arith.constant 0 : index
    %c0_38 = arith.constant 0 : index
    %62 = vector.load %arg6[%c0_37, %c0_38] : memref<1x8xf32, #tpu.memory_space<vmem>>, vector<1x8xf32>
    %63 = vector.broadcast %62 : vector<1x8xf32> to vector<128x8xf32>
    %64 = arith.addf %61, %63 : vector<128x8xf32>
    %65 = tpu.transpose %64, [1, 0] : vector<128x8xf32> -> vector<8x128xf32>
    %c0_39 = arith.constant 0 : index
    %c0_40 = arith.constant 0 : index
    %c0_41 = arith.constant 0 : index
    %66 = vector.load %arg7[%c0_39, %c0_40, %c0_41] : memref<1x8x128xf32, #tpu.memory_space<vmem>>, vector<1x8x128xf32>
    %67 = vector.shape_cast %66 : vector<1x8x128xf32> to vector<8x128xf32>
    %68 = vector.shape_cast %65 : vector<8x128xf32> to vector<1x8x128xf32>
    tpu.vector_store %arg7[%c0_39, %c0_40, %c0_41], %68 {strides = array<i32>} : memref<1x8x128xf32, #tpu.memory_space<vmem>>, vector<1x8x128xf32>,
    return
  }
  func.func @transform_0(%arg0: i32, %arg1: i32) -> (i32, i32, i32, i32) {
    %c0_i32 = arith.constant 0 : i32
    %c0_i32_0 = arith.constant 0 : i32
    %c0_i32_1 = arith.constant 0 : i32
    %c0_i32_2 = arith.constant 0 : i32
    return %arg0, %c0_i32, %c0_i32_0, %c0_i32_1 : i32, i32, i32, i32
  }
  func.func @transform_1(%arg0: i32, %arg1: i32) -> (i32, i32, i32) {
    %c0_i32 = arith.constant 0 : i32
    %c0_i32_0 = arith.constant 0 : i32
    %c0_i32_1 = arith.constant 0 : i32
    %c0_i32_2 = arith.constant 0 : i32
    return %c0_i32, %c0_i32_0, %c0_i32_1 : i32, i32, i32
  }
  func.func @transform_2(%arg0: i32, %arg1: i32) -> (i32, i32, i32) {
    %c0_i32 = arith.constant 0 : i32
    %c0_i32_0 = arith.constant 0 : i32
    %c0_i32_1 = arith.constant 0 : i32
    %c0_i32_2 = arith.constant 0 : i32
    return %c0_i32, %c0_i32_0, %c0_i32_1 : i32, i32, i32
  }
  func.func @transform_3(%arg0: i32, %arg1: i32) -> (i32, i32) {
    %c0_i32 = arith.constant 0 : i32
    %c0_i32_0 = arith.constant 0 : i32
    %c0_i32_1 = arith.constant 0 : i32
    return %c0_i32, %c0_i32_0 : i32, i32
  }
  func.func @transform_4(%arg0: i32, %arg1: i32) -> (i32, i32) {
    %c0_i32 = arith.constant 0 : i32
    %c0_i32_0 = arith.constant 0 : i32
    %c0_i32_1 = arith.constant 0 : i32
    return %c0_i32, %c0_i32_0 : i32, i32
  }
  func.func @transform_5(%arg0: i32, %arg1: i32) -> (i32, i32, i32) {
    %c0_i32 = arith.constant 0 : i32
    %c0_i32_0 = arith.constant 0 : i32
    return %arg0, %c0_i32, %arg1 : i32, i32, i32
  }
}

</mosaic_0001>

<llo_original>
// kernel: tpu_custom_call.1
$region0: #{tpu_custom_call.1}
  #allocation0 [shape = 'u32[]', space=smem, size = 0x4, offset = 0x4, fixed_abs, tag = 'smem constant byte address 0x4 - core index']
  #allocation1 [shape = 'u32[144,128]{1,0:T(1,128)}', space=vmem, size = 0x12000, scoped, tag = 'internal scratch']
  #allocation2 [shape = 'f32[18,18,4]{2,1,0:T(8,128)}', space=vmem, size = 0x36000, scoped, tag = 'scratch operand']
  #allocation3 [shape = 'bf16[128,36]{1,0:T(16,128)(2,1)}', space=vmem, size = 0x8000, scoped, tag = 'scratch operand']
  %s0 = inlined_call_operand.vmem [shape: f32[2,16,16,4], index: 0, kind: input, shape index: {}]
  %s1 = inlined_call_operand.vmem [shape: f32[1,1,4], index: 1, kind: input, shape index: {}]
  %s2 = inlined_call_operand.vmem [shape: f32[1,1,4], index: 2, kind: input, shape index: {}]
  %s3 = inlined_call_operand.vmem [shape: bf16[36,8], index: 3, kind: input, shape index: {}]
  %s4 = inlined_call_operand.vmem [shape: f32[1,8], index: 4, kind: input, shape index: {}]
  %s5 = inlined_call_operand.hbm [shape: f32[2,8,256], index: 5, kind: output, shape index: {}]
  %s6 = sld [smem:[#allocation0]]
  $region57: #{tpu_custom_call.1} parent=0
    _
  %s8 = ssub.s32 1, %s6
  %s9 = scalar_select 0, %s8, %s6
  $region1: #{tpu_custom_call.1} parent=0
    #allocation4 [shape = 'u8[8192]{0}', space=vmem, size = 0x2000, scoped, tag = 'output window, operand 0']
    #allocation5 [shape = 's32[2]{0}', space=sflag, size = 0x8, scoped, tag = 'scoped memory for tpu_custom_call.1']
    %10 = vsyncpa [#allocation5], 0
    %s11 = scalar_lea.sflag [#allocation5], 1
    %12 = vsyncpa %s11, 0
    loop: start=0, step=1, limit=6
    $region2: #{tpu_custom_call.1} parent=1 // loop_pre_header
      _
    $region3: #{tpu_custom_call.1} parent=1 // loop_header
      %s14 = sphi 0, %s18
      %p15 = scmp.ge.s32.totalorder %s14, 6
      %s21 = sphi 0, %s33
      %s22 = sphi 0, %s29
      %s23 = sphi 0, %s21
      %s24 = sphi 0, %s22
      %s25 = sphi 0, %s23
      %s26 = sphi 0, %s24
      %s36 = sphi 0, %s38
      %s39 = sphi 0, %s36
      %s40 = sphi 0, %s39
      %s56 = sphi 0, %s40
      %s60 = sphi 0, %s60
      %s62 = sphi 0, %s60
      %s63 = sphi 0, %s62
      %s77 = sphi 0, %s63
      %s81 = sphi 0, %s81
      %s83 = sphi 0, %s81
      %s84 = sphi 0, %s83
      %s98 = sphi 0, %s84
      %s102 = sphi 0, %s102
      %s104 = sphi 0, %s102
      %s105 = sphi 0, %s104
      %s119 = sphi 0, %s105
      %s123 = sphi 0, %s123
      %s125 = sphi 0, %s123
      %s126 = sphi 0, %s125
      %s140 = sphi 0, %s126
      %s148 = sphi 0, %s150
      %s151 = sphi 0, %s148
      %s152 = sphi 0, %s151
      %s168 = sphi 0, %s152
    $region4: #{tpu_custom_call.1} parent=1 // loop_header_branch
      %17 = sbr.rel (%p15) target = $region8
    $region5: #{tpu_custom_call.1} parent=1 // loop_body
      %s19 = ssub.s32 %s14, 1
      %s20 = ssub.s32 %s14, 2
      %s27 = sadd.s32 1, %s22
      %p28 = scmp.ge.s32.totalorder %s27, 2
      %s29 = scalar_select %p28, 0, %s27
      %s30 = sadd.s32 1, %s21
      %s31 = scalar_select %p28, %s30, %s21
      %p32 = scmp.ge.s32.totalorder %s31, 2
      %s33 = scalar_select %p32, 0, %s31
      %s34 = ssub.s32 %s21, %s33
      %p35 = scmp.eq.s32.totalorder %s34, 0
      %s37 = sadd.s32 %s36, 1
      %s38 = scalar_select %p35, %s36, %s37
      %p41 = pneg %p35
      %p42 = scmp.eq.s32.totalorder %s14, 3
      %p43 = por %p41, %p42
      %p44 = scmp.ne.s32.totalorder %s36, %s39
      %p45 = scmp.eq.s32.totalorder %s14, 0
      %p46 = por %p44, %p45
      %p47 = scmp.ne.s32.totalorder %s36, %s39
      %p48 = scmp.eq.s32.totalorder %s19, 3
      %p49 = por %p47, %p48
      %p50 = scmp.ne.s32.totalorder %s39, %s40
      %p51 = scmp.eq.s32.totalorder %s19, 0
      %p52 = por %p50, %p51
      %p53 = scmp.ne.s32.totalorder %s39, %s40
      %p54 = scmp.eq.s32.totalorder %s20, 3
      %p55 = por %p53, %p54
      %p57 = scmp.ne.s32.totalorder %s40, %s56
      %p58 = scmp.eq.s32.totalorder %s20, 0
      %p59 = por %p57, %p58
      %s61 = sadd.s32 %s60, 1
      %p64 = scmp.eq.s32.totalorder %s14, 3
      %p65 = scmp.ne.s32.totalorder %s60, %s62
      %p66 = scmp.eq.s32.totalorder %s14, 0
      %p67 = por %p65, %p66
      %p68 = scmp.ne.s32.totalorder %s60, %s62
      %p69 = scmp.eq.s32.totalorder %s19, 3
      %p70 = por %p68, %p69
      %p71 = scmp.ne.s32.totalorder %s62, %s63
      %p72 = scmp.eq.s32.totalorder %s19, 0
      %p73 = por %p71, %p72
      %p74 = scmp.ne.s32.totalorder %s62, %s63
      %p75 = scmp.eq.s32.totalorder %s20, 3
      %p76 = por %p74, %p75
      %p78 = scmp.ne.s32.totalorder %s63, %s77
      %p79 = scmp.eq.s32.totalorder %s20, 0
      %p80 = por %p78, %p79
      %s82 = sadd.s32 %s81, 1
      %p85 = scmp.eq.s32.totalorder %s14, 3
      %p86 = scmp.ne.s32.totalorder %s81, %s83
      %p87 = scmp.eq.s32.totalorder %s14, 0
      %p88 = por %p86, %p87
      %p89 = scmp.ne.s32.totalorder %s81, %s83
      %p90 = scmp.eq.s32.totalorder %s19, 3
      %p91 = por %p89, %p90
      %p92 = scmp.ne.s32.totalorder %s83, %s84
      %p93 = scmp.eq.s32.totalorder %s19, 0
      %p94 = por %p92, %p93
      %p95 = scmp.ne.s32.totalorder %s83, %s84
      %p96 = scmp.eq.s32.totalorder %s20, 3
      %p97 = por %p95, %p96
      %p99 = scmp.ne.s32.totalorder %s84, %s98
      %p100 = scmp.eq.s32.totalorder %s20, 0
      %p101 = por %p99, %p100
      %s103 = sadd.s32 %s102, 1
      %p106 = scmp.eq.s32.totalorder %s14, 3
      %p107 = scmp.ne.s32.totalorder %s102, %s104
      %p108 = scmp.eq.s32.totalorder %s14, 0
      %p109 = por %p107, %p108
      %p110 = scmp.ne.s32.totalorder %s102, %s104
      %p111 = scmp.eq.s32.totalorder %s19, 3
      %p112 = por %p110, %p111
      %p113 = scmp.ne.s32.totalorder %s104, %s105
      %p114 = scmp.eq.s32.totalorder %s19, 0
      %p115 = por %p113, %p114
      %p116 = scmp.ne.s32.totalorder %s104, %s105
      %p117 = scmp.eq.s32.totalorder %s20, 3
      %p118 = por %p116, %p117
      %p120 = scmp.ne.s32.totalorder %s105, %s119
      %p121 = scmp.eq.s32.totalorder %s20, 0
      %p122 = por %p120, %p121
      %s124 = sadd.s32 %s123, 1
      %p127 = scmp.eq.s32.totalorder %s14, 3
      %p128 = scmp.ne.s32.totalorder %s123, %s125
      %p129 = scmp.eq.s32.totalorder %s14, 0
      %p130 = por %p128, %p129
      %p131 = scmp.ne.s32.totalorder %s123, %s125
      %p132 = scmp.eq.s32.totalorder %s19, 3
      %p133 = por %p131, %p132
      %p134 = scmp.ne.s32.totalorder %s125, %s126
      %p135 = scmp.eq.s32.totalorder %s19, 0
      %p136 = por %p134, %p135
      %p137 = scmp.ne.s32.totalorder %s125, %s126
      %p138 = scmp.eq.s32.totalorder %s20, 3
      %p139 = por %p137, %p138
      %p141 = scmp.ne.s32.totalorder %s126, %s140
      %p142 = scmp.eq.s32.totalorder %s20, 0
      %p143 = por %p141, %p142
      %s144 = ssub.s32 %s21, %s33
      %s145 = ssub.s32 %s22, %s29
      %s146 = sor.u32 %s144, %s145
      %p147 = scmp.eq.s32.totalorder %s146, 0
      %s149 = sadd.s32 %s148, 1
      %s150 = scalar_select %p147, %s148, %s149
      %p153 = pneg %p147
      %p154 = scmp.eq.s32.totalorder %s14, 3
      %p155 = por %p153, %p154
      %p156 = scmp.ne.s32.totalorder %s148, %s151
      %p157 = scmp.eq.s32.totalorder %s14, 0
      %p158 = por %p156, %p157
      %p159 = scmp.ne.s32.totalorder %s148, %s151
      %p160 = scmp.eq.s32.totalorder %s19, 3
      %p161 = por %p159, %p160
      %p162 = scmp.ne.s32.totalorder %s151, %s152
      %p163 = scmp.eq.s32.totalorder %s19, 0
      %p164 = por %p162, %p163
      %p165 = scmp.ne.s32.totalorder %s151, %s152
      %p166 = scmp.eq.s32.totalorder %s20, 3
      %p167 = por %p165, %p166
      %p169 = scmp.ne.s32.totalorder %s152, %s168
      %p170 = scmp.eq.s32.totalorder %s20, 0
      %p171 = por %p169, %p170
      %p172 = scmp.le.s32.totalorder 1, %s14
      %p173 = scmp.lt.s32.totalorder %s14, 5
      %p174 = pnand %p172, %p173
      %p175 = pneg %p174
      // Predicated region
      $region9: #{tpu_custom_call.1} parent=5 // pred_check
        _
      $region10: #{tpu_custom_call.1} parent=5 // pred_check_branch
        %177 = sbr.rel (%p174) target = $region12
      $region11: #{tpu_custom_call.1} parent=5 // pred_region
        %s178 = ssub.s32 %s14, 1
        // Predicated region
        $region13: #{tpu_custom_call.1} parent=11 // pred_check
          %p179 = pneg %p73
        $region14: #{tpu_custom_call.1} parent=11 // pred_check_branch
          %181 = sbr.rel (%p179) target = $region16
        $region15: #{tpu_custom_call.1} parent=11 // pred_region
          _
        $region16: #{tpu_custom_call.1} parent=11 // pred_fallthru
          _
        // Predicated region
        $region17: #{tpu_custom_call.1} parent=11 // pred_check
          %p182 = pneg %p94
        $region18: #{tpu_custom_call.1} parent=11 // pred_check_branch
          %184 = sbr.rel (%p182) target = $region20
        $region19: #{tpu_custom_call.1} parent=11 // pred_region
          _
        $region20: #{tpu_custom_call.1} parent=11 // pred_fallthru
          _
        // Predicated region
        $region21: #{tpu_custom_call.1} parent=11 // pred_check
          %p185 = pneg %p115
        $region22: #{tpu_custom_call.1} parent=11 // pred_check_branch
          %187 = sbr.rel (%p185) target = $region24
        $region23: #{tpu_custom_call.1} parent=11 // pred_region
          _
        $region24: #{tpu_custom_call.1} parent=11 // pred_fallthru
          _
        // Predicated region
        $region25: #{tpu_custom_call.1} parent=11 // pred_check
          %p188 = pneg %p136
        $region26: #{tpu_custom_call.1} parent=11 // pred_check_branch
          %190 = sbr.rel (%p188) target = $region28
        $region27: #{tpu_custom_call.1} parent=11 // pred_region
          _
        $region28: #{tpu_custom_call.1} parent=11 // pred_fallthru
          _
      $region12: #{tpu_custom_call.1} parent=5 // pred_fallthru
        _
      %p191 = scmp.lt.s32.totalorder %s14, 4
      // Predicated region
      $region29: #{tpu_custom_call.1} parent=5 // pred_check
        %p192 = pneg %p191
      $region30: #{tpu_custom_call.1} parent=5 // pred_check_branch
        %194 = sbr.rel (%p192) target = $region32
      $region31: #{tpu_custom_call.1} parent=5 // pred_region
        // Predicated region
        $region33: #{tpu_custom_call.1} parent=31 // pred_check
          %p195 = pneg %p46
        $region34: #{tpu_custom_call.1} parent=31 // pred_check_branch
          %197 = sbr.rel (%p195) target = $region36
        $region35: #{tpu_custom_call.1} parent=31 // pred_region
          %p198 = scmp.lt.s32.totalorder %s21, 1
          %s199 = scalar_select %p198, %s21, 1
          %s200 = smul.addr %s199, 32
          %s201 = smul.addr %s200, 8
          %s202 = scalar_lea.vmem %s0, %s201
        $region36: #{tpu_custom_call.1} parent=31 // pred_fallthru
          _
      $region32: #{tpu_custom_call.1} parent=5 // pred_fallthru
        _
      %p203 = scmp.le.s32.totalorder 1, %s14
      %p204 = scmp.lt.s32.totalorder %s14, 5
      %p205 = pnand %p203, %p204
      %p206 = pneg %p205
      // Predicated region
      $region37: #{tpu_custom_call.1} parent=5 // pred_check
        _
      $region38: #{tpu_custom_call.1} parent=5 // pred_check_branch
        %208 = sbr.rel (%p205) target = $region40
      $region39: #{tpu_custom_call.1} parent=5 // pred_region
        %s209 = ssub.s32 %s14, 1
        %p210 = scmp.lt.s32.totalorder %s23, 1
        %s211 = scalar_select %p210, %s23, 1
        %s212 = smul.addr %s211, 32
        %s213 = smul.addr %s212, 8
        %s214 = scalar_lea.vmem %s0, %s213
        %p215 = pneg %p52
        %p216 = pneg %p49
        %p217 = pneg %p73
        %p218 = pneg %p70
        %p219 = pneg %p94
        %p220 = pneg %p91
        %p221 = pneg %p115
        %p222 = pneg %p112
        %p223 = pneg %p136
        %p224 = pneg %p133
        %p225 = pneg %p164
        %p226 = pneg %p161
        %s227 = sand.u32 %s151, 1
        %s228 = scalar_lea.sflag [#allocation5], %s227
        %s229 = sand.u32 %s151, 1
        %s230 = smul.addr %s229, 8
        %s231 = scalar_lea.vmem [#allocation4], %s230
        %p232 = scmp.lt.s32.totalorder %s23, 1
        %s233 = scalar_select %p232, %s23, 1
        %s234 = smul.addr %s233, 32
        %s235 = smul.addr %s234, 8
        %s236 = scalar_lea.vmem %s0, %s235
        %p238 = scmp.eq.s32.totalorder %s24, 0
        // Predicated region
        $region41: #{tpu_custom_call.1} parent=39 // pred_check
          %p239 = pneg %p238
        $region42: #{tpu_custom_call.1} parent=39 // pred_check_branch
          %241 = sbr.rel (%p239) target = $region44
        $region43: #{tpu_custom_call.1} parent=39 // pred_region
          %v242 = vld [vmem:[%s236] sm:$0xff]
          %v243 = vld [vmem:[%s236 + $0x8] sm:$0xff]
          %v244 = vld [vmem:[%s236 + $0x10] sm:$0xff]
          %v245 = vld [vmem:[%s236 + $0x18] sm:$0xff]
          %v246 = vld [vmem:[%s236 + $0x20] sm:$0xff]
          %v247 = vld [vmem:[%s236 + $0x28] sm:$0xff]
          %v248 = vld [vmem:[%s236 + $0x30] sm:$0xff]
          %v249 = vld [vmem:[%s236 + $0x38] sm:$0xff]
          %v250 = vld [vmem:[%s236 + $0x40] sm:$0xff]
          %v251 = vld [vmem:[%s236 + $0x48] sm:$0xff]
          %v252 = vld [vmem:[%s236 + $0x50] sm:$0xff]
          %v253 = vld [vmem:[%s236 + $0x58] sm:$0xff]
          %v254 = vld [vmem:[%s236 + $0x60] sm:$0xff]
          %v255 = vld [vmem:[%s236 + $0x68] sm:$0xff]
          %v256 = vld [vmem:[%s236 + $0x70] sm:$0xff]
          %v257 = vld [vmem:[%s236 + $0x78] sm:$0xff]
          %v258 = vld [vmem:[%s236 + $0x80] sm:$0xff]
          %v259 = vld [vmem:[%s236 + $0x88] sm:$0xff]
          %v260 = vld [vmem:[%s236 + $0x90] sm:$0xff]
          %v261 = vld [vmem:[%s236 + $0x98] sm:$0xff]
          %v262 = vld [vmem:[%s236 + $0xa0] sm:$0xff]
          %v263 = vld [vmem:[%s236 + $0xa8] sm:$0xff]
          %v264 = vld [vmem:[%s236 + $0xb0] sm:$0xff]
          %v265 = vld [vmem:[%s236 + $0xb8] sm:$0xff]
          %v266 = vld [vmem:[%s236 + $0xc0] sm:$0xff]
          %v267 = vld [vmem:[%s236 + $0xc8] sm:$0xff]
          %v268 = vld [vmem:[%s236 + $0xd0] sm:$0xff]
          %v269 = vld [vmem:[%s236 + $0xd8] sm:$0xff]
          %v270 = vld [vmem:[%s236 + $0xe0] sm:$0xff]
          %v271 = vld [vmem:[%s236 + $0xe8] sm:$0xff]
          %v272 = vld [vmem:[%s236 + $0xf0] sm:$0xff]
          %v273 = vld [vmem:[%s236 + $0xf8] sm:$0xff]
          %v274 = vld [vmem:[%s1] sm:$0x1]
          %v276 = vlaneseq
          %v277 = vshrl.u32 %v276, 7
          %v278 = vsub.s32 0, %v277
          %v279 = vrot.slane %v274, %v278
          %v281 = vmul.f32 %v242, %v279
          %v282 = vmul.f32 %v243, %v279
          %v283 = vmul.f32 %v244, %v279
          %v284 = vmul.f32 %v245, %v279
          %v285 = vmul.f32 %v246, %v279
          %v286 = vmul.f32 %v247, %v279
          %v287 = vmul.f32 %v248, %v279
          %v288 = vmul.f32 %v249, %v279
          %v289 = vmul.f32 %v250, %v279
          %v290 = vmul.f32 %v251, %v279
          %v291 = vmul.f32 %v252, %v279
          %v292 = vmul.f32 %v253, %v279
          %v293 = vmul.f32 %v254, %v279
          %v294 = vmul.f32 %v255, %v279
          %v295 = vmul.f32 %v256, %v279
          %v296 = vmul.f32 %v257, %v279
          %v297 = vmul.f32 %v258, %v279
          %v298 = vmul.f32 %v259, %v279
          %v299 = vmul.f32 %v260, %v279
          %v300 = vmul.f32 %v261, %v279
          %v301 = vmul.f32 %v262, %v279
          %v302 = vmul.f32 %v263, %v279
          %v303 = vmul.f32 %v264, %v279
          %v304 = vmul.f32 %v265, %v279
          %v305 = vmul.f32 %v266, %v279
          %v306 = vmul.f32 %v267, %v279
          %v307 = vmul.f32 %v268, %v279
          %v308 = vmul.f32 %v269, %v279
          %v309 = vmul.f32 %v270, %v279
          %v310 = vmul.f32 %v271, %v279
          %v311 = vmul.f32 %v272, %v279
          %v312 = vmul.f32 %v273, %v279
          %v313 = vld [vmem:[%s2] sm:$0x1]
          %v315 = vlaneseq
          %v316 = vshrl.u32 %v315, 7
          %v317 = vsub.s32 0, %v316
          %v318 = vrot.slane %v313, %v317
          %v320 = vadd.f32 %v281, %v318
          %v321 = vadd.f32 %v282, %v318
          %v322 = vadd.f32 %v283, %v318
          %v323 = vadd.f32 %v284, %v318
          %v324 = vadd.f32 %v285, %v318
          %v325 = vadd.f32 %v286, %v318
          %v326 = vadd.f32 %v287, %v318
          %v327 = vadd.f32 %v288, %v318
          %v328 = vadd.f32 %v289, %v318
          %v329 = vadd.f32 %v290, %v318
          %v330 = vadd.f32 %v291, %v318
          %v331 = vadd.f32 %v292, %v318
          %v332 = vadd.f32 %v293, %v318
          %v333 = vadd.f32 %v294, %v318
          %v334 = vadd.f32 %v295, %v318
          %v335 = vadd.f32 %v296, %v318
          %v336 = vadd.f32 %v297, %v318
          %v337 = vadd.f32 %v298, %v318
          %v338 = vadd.f32 %v299, %v318
          %v339 = vadd.f32 %v300, %v318
          %v340 = vadd.f32 %v301, %v318
          %v341 = vadd.f32 %v302, %v318
          %v342 = vadd.f32 %v303, %v318
          %v343 = vadd.f32 %v304, %v318
          %v344 = vadd.f32 %v305, %v318
          %v345 = vadd.f32 %v306, %v318
          %v346 = vadd.f32 %v307, %v318
          %v347 = vadd.f32 %v308, %v318
          %v348 = vadd.f32 %v309, %v318
          %v349 = vadd.f32 %v310, %v318
          %v350 = vadd.f32 %v311, %v318
          %v351 = vadd.f32 %v312, %v318
          %v352 = vmax.f32 %v320, 0.0
          %v353 = vmax.f32 %v321, 0.0
          %v354 = vmax.f32 %v322, 0.0
          %v355 = vmax.f32 %v323, 0.0
          %v356 = vmax.f32 %v324, 0.0
          %v357 = vmax.f32 %v325, 0.0
          %v358 = vmax.f32 %v326, 0.0
          %v359 = vmax.f32 %v327, 0.0
          %v360 = vmax.f32 %v328, 0.0
          %v361 = vmax.f32 %v329, 0.0
          %v362 = vmax.f32 %v330, 0.0
          %v363 = vmax.f32 %v331, 0.0
          %v364 = vmax.f32 %v332, 0.0
          %v365 = vmax.f32 %v333, 0.0
          %v366 = vmax.f32 %v334, 0.0
          %v367 = vmax.f32 %v335, 0.0
          %v368 = vmax.f32 %v336, 0.0
          %v369 = vmax.f32 %v337, 0.0
          %v370 = vmax.f32 %v338, 0.0
          %v371 = vmax.f32 %v339, 0.0
          %v372 = vmax.f32 %v340, 0.0
          %v373 = vmax.f32 %v341, 0.0
          %v374 = vmax.f32 %v342, 0.0
          %v375 = vmax.f32 %v343, 0.0
          %v376 = vmax.f32 %v344, 0.0
          %v377 = vmax.f32 %v345, 0.0
          %v378 = vmax.f32 %v346, 0.0
          %v379 = vmax.f32 %v347, 0.0
          %v380 = vmax.f32 %v348, 0.0
          %v381 = vmax.f32 %v349, 0.0
          %v382 = vmax.f32 %v350, 0.0
          %v383 = vmax.f32 %v351, 0.0
          %vm384 = vcmask 31744
          %385 = vst.msk [vmem:[#allocation2] sm:$0xff] %vm384, 0.0
          %386 = vst.msk [vmem:[#allocation2 + $0x8] sm:$0xff] %vm384, 0.0
          %vm387 = vcmask 25600
          %388 = vst.msk [vmem:[#allocation2 + $0x10] sm:$0x3] %vm387, 0.0
          %s389 = scalar_lea.vmem [#allocation2], 408
          %390 = vst.msk [vmem:[%s389] sm:$0xff] %vm384, 0.0
          %391 = vst.msk [vmem:[%s389 + $0x8] sm:$0xff] %vm384, 0.0
          %392 = vst.msk [vmem:[%s389 + $0x10] sm:$0x3] %vm387, 0.0
          %s393 = scalar_lea.vmem [#allocation2], 24
          %vm394 = vcmask 24576
          %395 = vst.msk [vmem:[%s393] sm:$0x1] %vm394, 0.0
          %396 = vst.msk [vmem:[%s393 + $0x18] sm:$0x1] %vm394, 0.0
          %397 = vst.msk [vmem:[%s393 + $0x30] sm:$0x1] %vm394, 0.0
          %398 = vst.msk [vmem:[%s393 + $0x48] sm:$0x1] %vm394, 0.0
          %399 = vst.msk [vmem:[%s393 + $0x60] sm:$0x1] %vm394, 0.0
          %400 = vst.msk [vmem:[%s393 + $0x78] sm:$0x1] %vm394, 0.0
          %401 = vst.msk [vmem:[%s393 + $0x90] sm:$0x1] %vm394, 0.0
          %402 = vst.msk [vmem:[%s393 + $0xa8] sm:$0x1] %vm394, 0.0
          %403 = vst.msk [vmem:[%s393 + $0xc0] sm:$0x1] %vm394, 0.0
          %404 = vst.msk [vmem:[%s393 + $0xd8] sm:$0x1] %vm394, 0.0
          %405 = vst.msk [vmem:[%s393 + $0xf0] sm:$0x1] %vm394, 0.0
          %406 = vst.msk [vmem:[%s393 + $0x108] sm:$0x1] %vm394, 0.0
          %407 = vst.msk [vmem:[%s393 + $0x120] sm:$0x1] %vm394, 0.0
          %408 = vst.msk [vmem:[%s393 + $0x138] sm:$0x1] %vm394, 0.0
          %409 = vst.msk [vmem:[%s393 + $0x150] sm:$0x1] %vm394, 0.0
          %410 = vst.msk [vmem:[%s393 + $0x168] sm:$0x1] %vm394, 0.0
          %411 = vst.msk [vmem:[%s393 + $0x11] sm:$0x1] %vm394, 0.0
          %412 = vst.msk [vmem:[%s393 + $0x29] sm:$0x1] %vm394, 0.0
          %413 = vst.msk [vmem:[%s393 + $0x41] sm:$0x1] %vm394, 0.0
          %414 = vst.msk [vmem:[%s393 + $0x59] sm:$0x1] %vm394, 0.0
          %415 = vst.msk [vmem:[%s393 + $0x71] sm:$0x1] %vm394, 0.0
          %416 = vst.msk [vmem:[%s393 + $0x89] sm:$0x1] %vm394, 0.0
          %417 = vst.msk [vmem:[%s393 + $0xa1] sm:$0x1] %vm394, 0.0
          %418 = vst.msk [vmem:[%s393 + $0xb9] sm:$0x1] %vm394, 0.0
          %419 = vst.msk [vmem:[%s393 + $0xd1] sm:$0x1] %vm394, 0.0
          %420 = vst.msk [vmem:[%s393 + $0xe9] sm:$0x1] %vm394, 0.0
          %421 = vst.msk [vmem:[%s393 + $0x101] sm:$0x1] %vm394, 0.0
          %422 = vst.msk [vmem:[%s393 + $0x119] sm:$0x1] %vm394, 0.0
          %423 = vst.msk [vmem:[%s393 + $0x131] sm:$0x1] %vm394, 0.0
          %424 = vst.msk [vmem:[%s393 + $0x149] sm:$0x1] %vm394, 0.0
          %425 = vst.msk [vmem:[%s393 + $0x161] sm:$0x1] %vm394, 0.0
          %426 = vst.msk [vmem:[%s393 + $0x179] sm:$0x1] %vm394, 0.0
          %427 = vst.msk [vmem:[%s393 + $0x1] sm:$0xff] %vm384, %v352
          %428 = vst.msk [vmem:[%s393 + $0x9] sm:$0xff] %vm384, %v353
          %429 = vst.msk [vmem:[%s393 + $0x19] sm:$0xff] %vm384, %v354
          %430 = vst.msk [vmem:[%s393 + $0x21] sm:$0xff] %vm384, %v355
          %431 = vst.msk [vmem:[%s393 + $0x31] sm:$0xff] %vm384, %v356
          %432 = vst.msk [vmem:[%s393 + $0x39] sm:$0xff] %vm384, %v357
          %433 = vst.msk [vmem:[%s393 + $0x49] sm:$0xff] %vm384, %v358
          %434 = vst.msk [vmem:[%s393 + $0x51] sm:$0xff] %vm384, %v359
          %435 = vst.msk [vmem:[%s393 + $0x61] sm:$0xff] %vm384, %v360
          %436 = vst.msk [vmem:[%s393 + $0x69] sm:$0xff] %vm384, %v361
          %437 = vst.msk [vmem:[%s393 + $0x79] sm:$0xff] %vm384, %v362
          %438 = vst.msk [vmem:[%s393 + $0x81] sm:$0xff] %vm384, %v363
          %439 = vst.msk [vmem:[%s393 + $0x91] sm:$0xff] %vm384, %v364
          %440 = vst.msk [vmem:[%s393 + $0x99] sm:$0xff] %vm384, %v365
          %441 = vst.msk [vmem:[%s393 + $0xa9] sm:$0xff] %vm384, %v366
          %442 = vst.msk [vmem:[%s393 + $0xb1] sm:$0xff] %vm384, %v367
          %443 = vst.msk [vmem:[%s393 + $0xc1] sm:$0xff] %vm384, %v368
          %444 = vst.msk [vmem:[%s393 + $0xc9] sm:$0xff] %vm384, %v369
          %445 = vst.msk [vmem:[%s393 + $0xd9] sm:$0xff] %vm384, %v370
          %446 = vst.msk [vmem:[%s393 + $0xe1] sm:$0xff] %vm384, %v371
          %447 = vst.msk [vmem:[%s393 + $0xf1] sm:$0xff] %vm384, %v372
          %448 = vst.msk [vmem:[%s393 + $0xf9] sm:$0xff] %vm384, %v373
          %449 = vst.msk [vmem:[%s393 + $0x109] sm:$0xff] %vm384, %v374
          %450 = vst.msk [vmem:[%s393 + $0x111] sm:$0xff] %vm384, %v375
          %451 = vst.msk [vmem:[%s393 + $0x121] sm:$0xff] %vm384, %v376
          %452 = vst.msk [vmem:[%s393 + $0x129] sm:$0xff] %vm384, %v377
          %453 = vst.msk [vmem:[%s393 + $0x139] sm:$0xff] %vm384, %v378
          %454 = vst.msk [vmem:[%s393 + $0x141] sm:$0xff] %vm384, %v379
          %455 = vst.msk [vmem:[%s393 + $0x151] sm:$0xff] %vm384, %v380
          %456 = vst.msk [vmem:[%s393 + $0x159] sm:$0xff] %vm384, %v381
          %457 = vst.msk [vmem:[%s393 + $0x169] sm:$0xff] %vm384, %v382
          %458 = vst.msk [vmem:[%s393 + $0x171] sm:$0xff] %vm384, %v383
        $region44: #{tpu_custom_call.1} parent=39 // pred_fallthru
          _
        %s459 = smul.u32 %s24, 8
        %s460 = smul.u32 %s459, 24
        %s461 = scalar_lea.vmem [#allocation2], %s460
        %v462 = vld [vmem:[%s461] sm:$0xff]
        %v463 = vld [vmem:[%s461 + $0x8] sm:$0xff]
        %v464 = vld [vmem:[%s461 + $0x18] sm:$0xff]
        %v465 = vld [vmem:[%s461 + $0x20] sm:$0xff]
        %v466 = vld [vmem:[%s461 + $0x30] sm:$0xff]
        %v467 = vld [vmem:[%s461 + $0x38] sm:$0xff]
        %v468 = vld [vmem:[%s461 + $0x48] sm:$0xff]
        %v469 = vld [vmem:[%s461 + $0x50] sm:$0xff]
        %v470 = vld [vmem:[%s461 + $0x60] sm:$0xff]
        %v471 = vld [vmem:[%s461 + $0x68] sm:$0xff]
        %v472 = vld [vmem:[%s461 + $0x78] sm:$0xff]
        %v473 = vld [vmem:[%s461 + $0x80] sm:$0xff]
        %v474 = vld [vmem:[%s461 + $0x90] sm:$0xff]
        %v475 = vld [vmem:[%s461 + $0x98] sm:$0xff]
        %v476 = vld [vmem:[%s461 + $0xa8] sm:$0xff]
        %v477 = vld [vmem:[%s461 + $0xb0] sm:$0xff]
        %v478 = vpack.c.bf16 %v463, %v462
        %v479 = vpack.c.bf16 %v465, %v464
        %v480 = vpack.c.bf16 %v467, %v466
        %v481 = vpack.c.bf16 %v469, %v468
        %v482 = vpack.c.bf16 %v471, %v470
        %v483 = vpack.c.bf16 %v473, %v472
        %v484 = vpack.c.bf16 %v475, %v474
        %v485 = vpack.c.bf16 %v477, %v476
        %vm486 = vcmask 31744
        %487 = vst.msk [vmem:[#allocation3] sm:$0xff] %vm486, %v478
        %488 = vst.msk [vmem:[#allocation3 + $0x8] sm:$0xff] %vm486, %v479
        %489 = vst.msk [vmem:[#allocation3 + $0x10] sm:$0xff] %vm486, %v480
        %490 = vst.msk [vmem:[#allocation3 + $0x18] sm:$0xff] %vm486, %v481
        %491 = vst.msk [vmem:[#allocation3 + $0x20] sm:$0xff] %vm486, %v482
        %492 = vst.msk [vmem:[#allocation3 + $0x28] sm:$0xff] %vm486, %v483
        %493 = vst.msk [vmem:[#allocation3 + $0x30] sm:$0xff] %vm486, %v484
        %494 = vst.msk [vmem:[#allocation3 + $0x38] sm:$0xff] %vm486, %v485
        %v495 = vld [vmem:[%s461 + $0x1] sm:$0xff]
        %v496 = vld [vmem:[%s461 + $0x9] sm:$0xff]
        %v497 = vld [vmem:[%s461 + $0x19] sm:$0xff]
        %v498 = vld [vmem:[%s461 + $0x21] sm:$0xff]
        %v499 = vld [vmem:[%s461 + $0x31] sm:$0xff]
        %v500 = vld [vmem:[%s461 + $0x39] sm:$0xff]
        %v501 = vld [vmem:[%s461 + $0x49] sm:$0xff]
        %v502 = vld [vmem:[%s461 + $0x51] sm:$0xff]
        %v503 = vld [vmem:[%s461 + $0x61] sm:$0xff]
        %v504 = vld [vmem:[%s461 + $0x69] sm:$0xff]
        %v505 = vld [vmem:[%s461 + $0x79] sm:$0xff]
        %v506 = vld [vmem:[%s461 + $0x81] sm:$0xff]
        %v507 = vld [vmem:[%s461 + $0x91] sm:$0xff]
        %v508 = vld [vmem:[%s461 + $0x99] sm:$0xff]
        %v509 = vld [vmem:[%s461 + $0xa9] sm:$0xff]
        %v510 = vld [vmem:[%s461 + $0xb1] sm:$0xff]
        %v511 = vpack.c.bf16 %v496, %v495
        %v512 = vpack.c.bf16 %v498, %v497
        %v513 = vpack.c.bf16 %v500, %v499
        %v514 = vpack.c.bf16 %v502, %v501
        %v515 = vpack.c.bf16 %v504, %v503
        %v516 = vpack.c.bf16 %v506, %v505
        %v517 = vpack.c.bf16 %v508, %v507
        %v518 = vpack.c.bf16 %v510, %v509
        %527 = vrot.lane.b32.xlu0 %v511, 4
        %v528 = vpop.permute.xlu0 %527
        %529 = vrot.lane.b32.xlu0 %v512, 4
        %v530 = vpop.permute.xlu0 %529
        %531 = vrot.lane.b32.xlu0 %v513, 4
        %v532 = vpop.permute.xlu0 %531
        %533 = vrot.lane.b32.xlu0 %v514, 4
        %v534 = vpop.permute.xlu0 %533
        %535 = vrot.lane.b32.xlu0 %v515, 4
        %v536 = vpop.permute.xlu0 %535
        %537 = vrot.lane.b32.xlu0 %v516, 4
        %v538 = vpop.permute.xlu0 %537
        %539 = vrot.lane.b32.xlu0 %v517, 4
        %v540 = vpop.permute.xlu0 %539
        %541 = vrot.lane.b32.xlu0 %v518, 4
        %v542 = vpop.permute.xlu0 %541
        %vm551 = vcmask 64544
        %552 = vst.msk [vmem:[#allocation3] sm:$0xff] %vm551, %v528
        %553 = vst.msk [vmem:[#allocation3 + $0x8] sm:$0xff] %vm551, %v530
        %554 = vst.msk [vmem:[#allocation3 + $0x10] sm:$0xff] %vm551, %v532
        %555 = vst.msk [vmem:[#allocation3 + $0x18] sm:$0xff] %vm551, %v534
        %556 = vst.msk [vmem:[#allocation3 + $0x20] sm:$0xff] %vm551, %v536
        %557 = vst.msk [vmem:[#allocation3 + $0x28] sm:$0xff] %vm551, %v538
        %558 = vst.msk [vmem:[#allocation3 + $0x30] sm:$0xff] %vm551, %v540
        %559 = vst.msk [vmem:[#allocation3 + $0x38] sm:$0xff] %vm551, %v542
        %v560 = vld [vmem:[%s461 + $0x2] sm:$0xff]
        %v561 = vld [vmem:[%s461 + $0xa] sm:$0xff]
        %v562 = vld [vmem:[%s461 + $0x1a] sm:$0xff]
        %v563 = vld [vmem:[%s461 + $0x22] sm:$0xff]
        %v564 = vld [vmem:[%s461 + $0x32] sm:$0xff]
        %v565 = vld [vmem:[%s461 + $0x3a] sm:$0xff]
        %v566 = vld [vmem:[%s461 + $0x4a] sm:$0xff]
        %v567 = vld [vmem:[%s461 + $0x52] sm:$0xff]
        %v568 = vld [vmem:[%s461 + $0x62] sm:$0xff]
        %v569 = vld [vmem:[%s461 + $0x6a] sm:$0xff]
        %v570 = vld [vmem:[%s461 + $0x7a] sm:$0xff]
        %v571 = vld [vmem:[%s461 + $0x82] sm:$0xff]
        %v572 = vld [vmem:[%s461 + $0x92] sm:$0xff]
        %v573 = vld [vmem:[%s461 + $0x9a] sm:$0xff]
        %v574 = vld [vmem:[%s461 + $0xaa] sm:$0xff]
        %v575 = vld [vmem:[%s461 + $0xb2] sm:$0xff]
        %v576 = vpack.c.bf16 %v561, %v560
        %v577 = vpack.c.bf16 %v563, %v562
        %v578 = vpack.c.bf16 %v565, %v564
        %v579 = vpack.c.bf16 %v567, %v566
        %v580 = vpack.c.bf16 %v569, %v568
        %v581 = vpack.c.bf16 %v571, %v570
        %v582 = vpack.c.bf16 %v573, %v572
        %v583 = vpack.c.bf16 %v575, %v574
        %592 = vrot.lane.b32.xlu0 %v576, 8
        %v593 = vpop.permute.xlu0 %592
        %594 = vrot.lane.b32.xlu0 %v577, 8
        %v595 = vpop.permute.xlu0 %594
        %596 = vrot.lane.b32.xlu0 %v578, 8
        %v597 = vpop.permute.xlu0 %596
        %598 = vrot.lane.b32.xlu0 %v579, 8
        %v599 = vpop.permute.xlu0 %598
        %600 = vrot.lane.b32.xlu0 %v580, 8
        %v601 = vpop.permute.xlu0 %600
        %602 = vrot.lane.b32.xlu0 %v581, 8
        %v603 = vpop.permute.xlu0 %602
        %604 = vrot.lane.b32.xlu0 %v582, 8
        %v605 = vpop.permute.xlu0 %604
        %606 = vrot.lane.b32.xlu0 %v583, 8
        %v607 = vpop.permute.xlu0 %606
        %vm616 = vcmask 97344
        %617 = vst.msk [vmem:[#allocation3] sm:$0xff] %vm616, %v593
        %618 = vst.msk [vmem:[#allocation3 + $0x8] sm:$0xff] %vm616, %v595
        %619 = vst.msk [vmem:[#allocation3 + $0x10] sm:$0xff] %vm616, %v597
        %620 = vst.msk [vmem:[#allocation3 + $0x18] sm:$0xff] %vm616, %v599
        %621 = vst.msk [vmem:[#allocation3 + $0x20] sm:$0xff] %vm616, %v601
        %622 = vst.msk [vmem:[#allocation3 + $0x28] sm:$0xff] %vm616, %v603
        %623 = vst.msk [vmem:[#allocation3 + $0x30] sm:$0xff] %vm616, %v605
        %624 = vst.msk [vmem:[#allocation3 + $0x38] sm:$0xff] %vm616, %v607
        %s625 = sadd.s32 %s459, 1
        %s626 = smul.u32 %s625, 24
        %s627 = scalar_lea.vmem [#allocation2], %s626
        %v628 = vld [vmem:[%s627] sm:$0xff]
        %v629 = vld [vmem:[%s627 + $0x8] sm:$0xff]
        %v630 = vld [vmem:[%s627 + $0x18] sm:$0xff]
        %v631 = vld [vmem:[%s627 + $0x20] sm:$0xff]
        %v632 = vld [vmem:[%s627 + $0x30] sm:$0xff]
        %v633 = vld [vmem:[%s627 + $0x38] sm:$0xff]
        %v634 = vld [vmem:[%s627 + $0x48] sm:$0xff]
        %v635 = vld [vmem:[%s627 + $0x50] sm:$0xff]
        %v636 = vld [vmem:[%s627 + $0x60] sm:$0xff]
        %v637 = vld [vmem:[%s627 + $0x68] sm:$0xff]
        %v638 = vld [vmem:[%s627 + $0x78] sm:$0xff]
        %v639 = vld [vmem:[%s627 + $0x80] sm:$0xff]
        %v640 = vld [vmem:[%s627 + $0x90] sm:$0xff]
        %v641 = vld [vmem:[%s627 + $0x98] sm:$0xff]
        %v642 = vld [vmem:[%s627 + $0xa8] sm:$0xff]
        %v643 = vld [vmem:[%s627 + $0xb0] sm:$0xff]
        %v644 = vpack.c.bf16 %v629, %v628
        %v645 = vpack.c.bf16 %v631, %v630
        %v646 = vpack.c.bf16 %v633, %v632
        %v647 = vpack.c.bf16 %v635, %v634
        %v648 = vpack.c.bf16 %v637, %v636
        %v649 = vpack.c.bf16 %v639, %v638
        %v650 = vpack.c.bf16 %v641, %v640
        %v651 = vpack.c.bf16 %v643, %v642
        %660 = vrot.lane.b32.xlu0 %v644, 12
        %v661 = vpop.permute.xlu0 %660
        %662 = vrot.lane.b32.xlu0 %v645, 12
        %v663 = vpop.permute.xlu0 %662
        %664 = vrot.lane.b32.xlu0 %v646, 12
        %v665 = vpop.permute.xlu0 %664
        %666 = vrot.lane.b32.xlu0 %v647, 12
        %v667 = vpop.permute.xlu0 %666
        %668 = vrot.lane.b32.xlu0 %v648, 12
        %v669 = vpop.permute.xlu0 %668
        %670 = vrot.lane.b32.xlu0 %v649, 12
        %v671 = vpop.permute.xlu0 %670
        %672 = vrot.lane.b32.xlu0 %v650, 12
        %v673 = vpop.permute.xlu0 %672
        %674 = vrot.lane.b32.xlu0 %v651, 12
        %v675 = vpop.permute.xlu0 %674
        %vm684 = vcmask 130144
        %685 = vst.msk [vmem:[#allocation3] sm:$0xff] %vm684, %v661
        %686 = vst.msk [vmem:[#allocation3 + $0x8] sm:$0xff] %vm684, %v663
        %687 = vst.msk [vmem:[#allocation3 + $0x10] sm:$0xff] %vm684, %v665
        %688 = vst.msk [vmem:[#allocation3 + $0x18] sm:$0xff] %vm684, %v667
        %689 = vst.msk [vmem:[#allocation3 + $0x20] sm:$0xff] %vm684, %v669
        %690 = vst.msk [vmem:[#allocation3 + $0x28] sm:$0xff] %vm684, %v671
        %691 = vst.msk [vmem:[#allocation3 + $0x30] sm:$0xff] %vm684, %v673
        %692 = vst.msk [vmem:[#allocation3 + $0x38] sm:$0xff] %vm684, %v675
        %v693 = vld [vmem:[%s627 + $0x1] sm:$0xff]
        %v694 = vld [vmem:[%s627 + $0x9] sm:$0xff]
        %v695 = vld [vmem:[%s627 + $0x19] sm:$0xff]
        %v696 = vld [vmem:[%s627 + $0x21] sm:$0xff]
        %v697 = vld [vmem:[%s627 + $0x31] sm:$0xff]
        %v698 = vld [vmem:[%s627 + $0x39] sm:$0xff]
        %v699 = vld [vmem:[%s627 + $0x49] sm:$0xff]
        %v700 = vld [vmem:[%s627 + $0x51] sm:$0xff]
        %v701 = vld [vmem:[%s627 + $0x61] sm:$0xff]
        %v702 = vld [vmem:[%s627 + $0x69] sm:$0xff]
        %v703 = vld [vmem:[%s627 + $0x79] sm:$0xff]
        %v704 = vld [vmem:[%s627 + $0x81] sm:$0xff]
        %v705 = vld [vmem:[%s627 + $0x91] sm:$0xff]
        %v706 = vld [vmem:[%s627 + $0x99] sm:$0xff]
        %v707 = vld [vmem:[%s627 + $0xa9] sm:$0xff]
        %v708 = vld [vmem:[%s627 + $0xb1] sm:$0xff]
        %v709 = vpack.c.bf16 %v694, %v693
        %v710 = vpack.c.bf16 %v696, %v695
        %v711 = vpack.c.bf16 %v698, %v697
        %v712 = vpack.c.bf16 %v700, %v699
        %v713 = vpack.c.bf16 %v702, %v701
        %v714 = vpack.c.bf16 %v704, %v703
        %v715 = vpack.c.bf16 %v706, %v705
        %v716 = vpack.c.bf16 %v708, %v707
        %725 = vrot.lane.b32.xlu0 %v709, 16
        %v726 = vpop.permute.xlu0 %725
        %727 = vrot.lane.b32.xlu0 %v710, 16
        %v728 = vpop.permute.xlu0 %727
        %729 = vrot.lane.b32.xlu0 %v711, 16
        %v730 = vpop.permute.xlu0 %729
        %731 = vrot.lane.b32.xlu0 %v712, 16
        %v732 = vpop.permute.xlu0 %731
        %733 = vrot.lane.b32.xlu0 %v713, 16
        %v734 = vpop.permute.xlu0 %733
        %735 = vrot.lane.b32.xlu0 %v714, 16
        %v736 = vpop.permute.xlu0 %735
        %737 = vrot.lane.b32.xlu0 %v715, 16
        %v738 = vpop.permute.xlu0 %737
        %739 = vrot.lane.b32.xlu0 %v716, 16
        %v740 = vpop.permute.xlu0 %739
        %vm749 = vcmask 162944
        %750 = vst.msk [vmem:[#allocation3] sm:$0xff] %vm749, %v726
        %751 = vst.msk [vmem:[#allocation3 + $0x8] sm:$0xff] %vm749, %v728
        %752 = vst.msk [vmem:[#allocation3 + $0x10] sm:$0xff] %vm749, %v730
        %753 = vst.msk [vmem:[#allocation3 + $0x18] sm:$0xff] %vm749, %v732
        %754 = vst.msk [vmem:[#allocation3 + $0x20] sm:$0xff] %vm749, %v734
        %755 = vst.msk [vmem:[#allocation3 + $0x28] sm:$0xff] %vm749, %v736
        %756 = vst.msk [vmem:[#allocation3 + $0x30] sm:$0xff] %vm749, %v738
        %757 = vst.msk [vmem:[#allocation3 + $0x38] sm:$0xff] %vm749, %v740
        %v758 = vld [vmem:[%s627 + $0x2] sm:$0xff]
        %v759 = vld [vmem:[%s627 + $0xa] sm:$0xff]
        %v760 = vld [vmem:[%s627 + $0x1a] sm:$0xff]
        %v761 = vld [vmem:[%s627 + $0x22] sm:$0xff]
        %v762 = vld [vmem:[%s627 + $0x32] sm:$0xff]
        %v763 = vld [vmem:[%s627 + $0x3a] sm:$0xff]
        %v764 = vld [vmem:[%s627 + $0x4a] sm:$0xff]
        %v765 = vld [vmem:[%s627 + $0x52] sm:$0xff]
        %v766 = vld [vmem:[%s627 + $0x62] sm:$0xff]
        %v767 = vld [vmem:[%s627 + $0x6a] sm:$0xff]
        %v768 = vld [vmem:[%s627 + $0x7a] sm:$0xff]
        %v769 = vld [vmem:[%s627 + $0x82] sm:$0xff]
        %v770 = vld [vmem:[%s627 + $0x92] sm:$0xff]
        %v771 = vld [vmem:[%s627 + $0x9a] sm:$0xff]
        %v772 = vld [vmem:[%s627 + $0xaa] sm:$0xff]
        %v773 = vld [vmem:[%s627 + $0xb2] sm:$0xff]
        %v774 = vpack.c.bf16 %v759, %v758
        %v775 = vpack.c.bf16 %v761, %v760
        %v776 = vpack.c.bf16 %v763, %v762
        %v777 = vpack.c.bf16 %v765, %v764
        %v778 = vpack.c.bf16 %v767, %v766
        %v779 = vpack.c.bf16 %v769, %v768
        %v780 = vpack.c.bf16 %v771, %v770
        %v781 = vpack.c.bf16 %v773, %v772
        %790 = vrot.lane.b32.xlu0 %v774, 20
        %v791 = vpop.permute.xlu0 %790
        %792 = vrot.lane.b32.xlu0 %v775, 20
        %v793 = vpop.permute.xlu0 %792
        %794 = vrot.lane.b32.xlu0 %v776, 20
        %v795 = vpop.permute.xlu0 %794
        %796 = vrot.lane.b32.xlu0 %v777, 20
        %v797 = vpop.permute.xlu0 %796
        %798 = vrot.lane.b32.xlu0 %v778, 20
        %v799 = vpop.permute.xlu0 %798
        %800 = vrot.lane.b32.xlu0 %v779, 20
        %v801 = vpop.permute.xlu0 %800
        %802 = vrot.lane.b32.xlu0 %v780, 20
        %v803 = vpop.permute.xlu0 %802
        %804 = vrot.lane.b32.xlu0 %v781, 20
        %v805 = vpop.permute.xlu0 %804
        %vm814 = vcmask 195744
        %815 = vst.msk [vmem:[#allocation3] sm:$0xff] %vm814, %v791
        %816 = vst.msk [vmem:[#allocation3 + $0x8] sm:$0xff] %vm814, %v793
        %817 = vst.msk [vmem:[#allocation3 + $0x10] sm:$0xff] %vm814, %v795
        %818 = vst.msk [vmem:[#allocation3 + $0x18] sm:$0xff] %vm814, %v797
        %819 = vst.msk [vmem:[#allocation3 + $0x20] sm:$0xff] %vm814, %v799
        %820 = vst.msk [vmem:[#allocation3 + $0x28] sm:$0xff] %vm814, %v801
        %821 = vst.msk [vmem:[#allocation3 + $0x30] sm:$0xff] %vm814, %v803
        %822 = vst.msk [vmem:[#allocation3 + $0x38] sm:$0xff] %vm814, %v805
        %s823 = sadd.s32 %s459, 2
        %s824 = smul.u32 %s823, 24
        %s825 = scalar_lea.vmem [#allocation2], %s824
        %v826 = vld [vmem:[%s825] sm:$0xff]
        %v827 = vld [vmem:[%s825 + $0x8] sm:$0xff]
        %v828 = vld [vmem:[%s825 + $0x18] sm:$0xff]
        %v829 = vld [vmem:[%s825 + $0x20] sm:$0xff]
        %v830 = vld [vmem:[%s825 + $0x30] sm:$0xff]
        %v831 = vld [vmem:[%s825 + $0x38] sm:$0xff]
        %v832 = vld [vmem:[%s825 + $0x48] sm:$0xff]
        %v833 = vld [vmem:[%s825 + $0x50] sm:$0xff]
        %v834 = vld [vmem:[%s825 + $0x60] sm:$0xff]
        %v835 = vld [vmem:[%s825 + $0x68] sm:$0xff]
        %v836 = vld [vmem:[%s825 + $0x78] sm:$0xff]
        %v837 = vld [vmem:[%s825 + $0x80] sm:$0xff]
        %v838 = vld [vmem:[%s825 + $0x90] sm:$0xff]
        %v839 = vld [vmem:[%s825 + $0x98] sm:$0xff]
        %v840 = vld [vmem:[%s825 + $0xa8] sm:$0xff]
        %v841 = vld [vmem:[%s825 + $0xb0] sm:$0xff]
        %v842 = vpack.c.bf16 %v827, %v826
        %v843 = vpack.c.bf16 %v829, %v828
        %v844 = vpack.c.bf16 %v831, %v830
        %v845 = vpack.c.bf16 %v833, %v832
        %v846 = vpack.c.bf16 %v835, %v834
        %v847 = vpack.c.bf16 %v837, %v836
        %v848 = vpack.c.bf16 %v839, %v838
        %v849 = vpack.c.bf16 %v841, %v840
        %858 = vrot.lane.b32.xlu0 %v842, 24
        %v859 = vpop.permute.xlu0 %858
        %860 = vrot.lane.b32.xlu0 %v843, 24
        %v861 = vpop.permute.xlu0 %860
        %862 = vrot.lane.b32.xlu0 %v844, 24
        %v863 = vpop.permute.xlu0 %862
        %864 = vrot.lane.b32.xlu0 %v845, 24
        %v865 = vpop.permute.xlu0 %864
        %866 = vrot.lane.b32.xlu0 %v846, 24
        %v867 = vpop.permute.xlu0 %866
        %868 = vrot.lane.b32.xlu0 %v847, 24
        %v869 = vpop.permute.xlu0 %868
        %870 = vrot.lane.b32.xlu0 %v848, 24
        %v871 = vpop.permute.xlu0 %870
        %872 = vrot.lane.b32.xlu0 %v849, 24
        %v873 = vpop.permute.xlu0 %872
        %vm882 = vcmask 228544
        %883 = vst.msk [vmem:[#allocation3] sm:$0xff] %vm882, %v859
        %884 = vst.msk [vmem:[#allocation3 + $0x8] sm:$0xff] %vm882, %v861
        %885 = vst.msk [vmem:[#allocation3 + $0x10] sm:$0xff] %vm882, %v863
        %886 = vst.msk [vmem:[#allocation3 + $0x18] sm:$0xff] %vm882, %v865
        %887 = vst.msk [vmem:[#allocation3 + $0x20] sm:$0xff] %vm882, %v867
        %888 = vst.msk [vmem:[#allocation3 + $0x28] sm:$0xff] %vm882, %v869
        %889 = vst.msk [vmem:[#allocation3 + $0x30] sm:$0xff] %vm882, %v871
        %890 = vst.msk [vmem:[#allocation3 + $0x38] sm:$0xff] %vm882, %v873
        %v891 = vld [vmem:[%s825 + $0x1] sm:$0xff]
        %v892 = vld [vmem:[%s825 + $0x9] sm:$0xff]
        %v893 = vld [vmem:[%s825 + $0x19] sm:$0xff]
        %v894 = vld [vmem:[%s825 + $0x21] sm:$0xff]
        %v895 = vld [vmem:[%s825 + $0x31] sm:$0xff]
        %v896 = vld [vmem:[%s825 + $0x39] sm:$0xff]
        %v897 = vld [vmem:[%s825 + $0x49] sm:$0xff]
        %v898 = vld [vmem:[%s825 + $0x51] sm:$0xff]
        %v899 = vld [vmem:[%s825 + $0x61] sm:$0xff]
        %v900 = vld [vmem:[%s825 + $0x69] sm:$0xff]
        %v901 = vld [vmem:[%s825 + $0x79] sm:$0xff]
        %v902 = vld [vmem:[%s825 + $0x81] sm:$0xff]
        %v903 = vld [vmem:[%s825 + $0x91] sm:$0xff]
        %v904 = vld [vmem:[%s825 + $0x99] sm:$0xff]
        %v905 = vld [vmem:[%s825 + $0xa9] sm:$0xff]
        %v906 = vld [vmem:[%s825 + $0xb1] sm:$0xff]
        %v907 = vpack.c.bf16 %v892, %v891
        %v908 = vpack.c.bf16 %v894, %v893
        %v909 = vpack.c.bf16 %v896, %v895
        %v910 = vpack.c.bf16 %v898, %v897
        %v911 = vpack.c.bf16 %v900, %v899
        %v912 = vpack.c.bf16 %v902, %v901
        %v913 = vpack.c.bf16 %v904, %v903
        %v914 = vpack.c.bf16 %v906, %v905
        %923 = vrot.lane.b32.xlu0 %v907, 28
        %v924 = vpop.permute.xlu0 %923
        %925 = vrot.lane.b32.xlu0 %v908, 28
        %v926 = vpop.permute.xlu0 %925
        %927 = vrot.lane.b32.xlu0 %v909, 28
        %v928 = vpop.permute.xlu0 %927
        %929 = vrot.lane.b32.xlu0 %v910, 28
        %v930 = vpop.permute.xlu0 %929
        %931 = vrot.lane.b32.xlu0 %v911, 28
        %v932 = vpop.permute.xlu0 %931
        %933 = vrot.lane.b32.xlu0 %v912, 28
        %v934 = vpop.permute.xlu0 %933
        %935 = vrot.lane.b32.xlu0 %v913, 28
        %v936 = vpop.permute.xlu0 %935
        %937 = vrot.lane.b32.xlu0 %v914, 28
        %v938 = vpop.permute.xlu0 %937
        %vm947 = vcmask 261344
        %948 = vst.msk [vmem:[#allocation3] sm:$0xff] %vm947, %v924
        %949 = vst.msk [vmem:[#allocation3 + $0x8] sm:$0xff] %vm947, %v926
        %950 = vst.msk [vmem:[#allocation3 + $0x10] sm:$0xff] %vm947, %v928
        %951 = vst.msk [vmem:[#allocation3 + $0x18] sm:$0xff] %vm947, %v930
        %952 = vst.msk [vmem:[#allocation3 + $0x20] sm:$0xff] %vm947, %v932
        %953 = vst.msk [vmem:[#allocation3 + $0x28] sm:$0xff] %vm947, %v934
        %954 = vst.msk [vmem:[#allocation3 + $0x30] sm:$0xff] %vm947, %v936
        %955 = vst.msk [vmem:[#allocation3 + $0x38] sm:$0xff] %vm947, %v938
        %v956 = vld [vmem:[%s825 + $0x2] sm:$0xff]
        %v957 = vld [vmem:[%s825 + $0xa] sm:$0xff]
        %v958 = vld [vmem:[%s825 + $0x1a] sm:$0xff]
        %v959 = vld [vmem:[%s825 + $0x22] sm:$0xff]
        %v960 = vld [vmem:[%s825 + $0x32] sm:$0xff]
        %v961 = vld [vmem:[%s825 + $0x3a] sm:$0xff]
        %v962 = vld [vmem:[%s825 + $0x4a] sm:$0xff]
        %v963 = vld [vmem:[%s825 + $0x52] sm:$0xff]
        %v964 = vld [vmem:[%s825 + $0x62] sm:$0xff]
        %v965 = vld [vmem:[%s825 + $0x6a] sm:$0xff]
        %v966 = vld [vmem:[%s825 + $0x7a] sm:$0xff]
        %v967 = vld [vmem:[%s825 + $0x82] sm:$0xff]
        %v968 = vld [vmem:[%s825 + $0x92] sm:$0xff]
        %v969 = vld [vmem:[%s825 + $0x9a] sm:$0xff]
        %v970 = vld [vmem:[%s825 + $0xaa] sm:$0xff]
        %v971 = vld [vmem:[%s825 + $0xb2] sm:$0xff]
        %v972 = vpack.c.bf16 %v957, %v956
        %v973 = vpack.c.bf16 %v959, %v958
        %v974 = vpack.c.bf16 %v961, %v960
        %v975 = vpack.c.bf16 %v963, %v962
        %v976 = vpack.c.bf16 %v965, %v964
        %v977 = vpack.c.bf16 %v967, %v966
        %v978 = vpack.c.bf16 %v969, %v968
        %v979 = vpack.c.bf16 %v971, %v970
        %988 = vrot.lane.b32.xlu0 %v972, 32
        %v989 = vpop.permute.xlu0 %988
        %990 = vrot.lane.b32.xlu0 %v973, 32
        %v991 = vpop.permute.xlu0 %990
        %992 = vrot.lane.b32.xlu0 %v974, 32
        %v993 = vpop.permute.xlu0 %992
        %994 = vrot.lane.b32.xlu0 %v975, 32
        %v995 = vpop.permute.xlu0 %994
        %996 = vrot.lane.b32.xlu0 %v976, 32
        %v997 = vpop.permute.xlu0 %996
        %998 = vrot.lane.b32.xlu0 %v977, 32
        %v999 = vpop.permute.xlu0 %998
        %1000 = vrot.lane.b32.xlu0 %v978, 32
        %v1001 = vpop.permute.xlu0 %1000
        %1002 = vrot.lane.b32.xlu0 %v979, 32
        %v1003 = vpop.permute.xlu0 %1002
        %vm1012 = vcmask 294144
        %1013 = vst.msk [vmem:[#allocation3] sm:$0xff] %vm1012, %v989
        %1014 = vst.msk [vmem:[#allocation3 + $0x8] sm:$0xff] %vm1012, %v991
        %1015 = vst.msk [vmem:[#allocation3 + $0x10] sm:$0xff] %vm1012, %v993
        %1016 = vst.msk [vmem:[#allocation3 + $0x18] sm:$0xff] %vm1012, %v995
        %1017 = vst.msk [vmem:[#allocation3 + $0x20] sm:$0xff] %vm1012, %v997
        %1018 = vst.msk [vmem:[#allocation3 + $0x28] sm:$0xff] %vm1012, %v999
        %1019 = vst.msk [vmem:[#allocation3 + $0x30] sm:$0xff] %vm1012, %v1001
        %1020 = vst.msk [vmem:[#allocation3 + $0x38] sm:$0xff] %vm1012, %v1003
        %v1021 = vld [vmem:[#allocation3] sm:$0xff]
        %v1022 = vld [vmem:[#allocation3 + $0x8] sm:$0xff]
        %v1023 = vld [vmem:[#allocation3 + $0x10] sm:$0xff]
        %v1024 = vld [vmem:[#allocation3 + $0x18] sm:$0xff]
        %v1025 = vld [vmem:[#allocation3 + $0x20] sm:$0xff]
        %v1026 = vld [vmem:[#allocation3 + $0x28] sm:$0xff]
        %v1027 = vld [vmem:[#allocation3 + $0x30] sm:$0xff]
        %v1028 = vld [vmem:[#allocation3 + $0x38] sm:$0xff]
        %v1029 = vld [vmem:[%s3] sm:$0xf]
        %v1030 = vld [vmem:[%s3 + $0x4] sm:$0xf]
        %v1031 = vld [vmem:[%s3 + $0x8] sm:$0xf]
        %v1032 = vld [vmem:[%s3 + $0xc] sm:$0xf]
        %v1033 = vld [vmem:[%s3 + $0x10] sm:$0x3]
        %v1034 = vld [vmem:[%s4] sm:$0x1]
        %v1036 = vlaneseq
        %v1037 = vshrl.u32 %v1036, 7
        %v1038 = vsub.s32 0, %v1037
        %v1039 = vrot.slane %v1034, %v1038
        %v1046 = vunpack.c.l.b16 %v1029
        %v1047 = vunpack.c.l.b16 %v1030
        %v1048 = vunpack.c.l.b16 %v1031
        %v1049 = vunpack.c.l.b16 %v1032
        %v1050 = vunpack.c.l.b16 %v1033
        %v1051 = vpack.c.b16 %v1047, %v1046
        %v1052 = vpack.c.b16 %v1049, %v1048
        %v1053 = vpack.c.b16 %v1050, %v1050
        %vm1056 = vcmask 293888
        %v1058 = vsel %vm1056, %v1021, 0
        %v1061 = vsel %vm1056, %v1022, 0
        %v1064 = vsel %vm1056, %v1023, 0
        %v1067 = vsel %vm1056, %v1024, 0
        %v1070 = vsel %vm1056, %v1025, 0
        %v1073 = vsel %vm1056, %v1026, 0
        %v1076 = vsel %vm1056, %v1027, 0
        %v1079 = vsel %vm1056, %v1028, 0
        %vm1081 = vcmask 1041408
        %v1083 = vsel %vm1081, %v1053, 0
        %1085 = vmatprep.subr.bf16.mxu0 0
        %1086 = vmatpush1.bf16.msra.mxu0 %v1051
        %1087 = vmatprep.subr.bf16.mxu0 0
        %1088 = vmatpush1.bf16.msra.mxu0 %v1052
        %1089 = vmatprep.subr.bf16.mxu0 0
        %1090 = vmatpush1.bf16.msra.mxu0 %v1083
        %1091 = vmatprep.subr.bf16.mxu0 0
        %1092 = vmatpush1.bf16.msra.mxu0 0
        %1093 = vmatprep.subr.bf16.mxu0 0
        %1094 = vmatpush1.bf16.msra.mxu0 0
        %1095 = vmatprep.subr.bf16.mxu0 0
        %1096 = vmatpush1.bf16.msra.mxu0 0
        %1097 = vmatprep.subr.bf16.mxu0 0
        %1098 = vmatpush1.bf16.msra.mxu0 0
        %1099 = vmatprep.subr.bf16.mxu0 0
        %1100 = vmatpush1.bf16.msra.mxu0 0
        %1101 = vmatprep.subr.bf16.mxu0 0
        %1102 = vmatpush1.bf16.msra.mxu0 0
        %1103 = vmatprep.subr.bf16.mxu0 0
        %1104 = vmatpush1.bf16.msra.mxu0 0
        %1105 = vmatprep.subr.bf16.mxu0 0
        %1106 = vmatpush1.bf16.msra.mxu0 0
        %1107 = vmatprep.subr.bf16.mxu0 0
        %1108 = vmatpush1.bf16.msra.mxu0 0
        %1109 = vmatprep.subr.bf16.mxu0 0
        %1110 = vmatpush1.bf16.msra.mxu0 0
        %1111 = vmatprep.subr.bf16.mxu0 0
        %1112 = vmatpush1.bf16.msra.mxu0 0
        %1113 = vmatprep.subr.bf16.mxu0 0
        %1114 = vmatpush1.bf16.msra.mxu0 0
        %1115 = vmatprep.subr.bf16.mxu0 0
        %1116 = vmatpush1.bf16.msra.mxu0 0
        %1117 = vmatprep.mubr.bf16.mxu0 0
        %1118 = vmatmul.mubr.bf16.gmra.mrb[0].mxu0 %v1058
        %v1119 = vpop.f32.mrb[0].mxu0
        %v1120 = vadd.f32 %v1039, %v1119
        %v1121 = vpop.f32.mrb[0].mxu0
        %v1122 = vpop.f32.mrb[0].mxu0
        %v1123 = vadd.f32 %v1039, %v1122
        %v1124 = vpop.f32.mrb[0].mxu0
        %1125 = vmatprep.mubr.bf16.mxu0 0
        %1126 = vmatmul.mubr.bf16.gmra.mrb[0].mxu0 %v1061
        %v1127 = vpop.f32.mrb[0].mxu0
        %v1128 = vadd.f32 %v1039, %v1127
        %v1129 = vpop.f32.mrb[0].mxu0
        %v1130 = vpop.f32.mrb[0].mxu0
        %v1131 = vadd.f32 %v1039, %v1130
        %v1132 = vpop.f32.mrb[0].mxu0
        %1133 = vmatprep.mubr.bf16.mxu0 0
        %1134 = vmatmul.mubr.bf16.gmra.mrb[0].mxu0 %v1064
        %v1135 = vpop.f32.mrb[0].mxu0
        %v1136 = vadd.f32 %v1039, %v1135
        %v1137 = vpop.f32.mrb[0].mxu0
        %v1138 = vpop.f32.mrb[0].mxu0
        %v1139 = vadd.f32 %v1039, %v1138
        %v1140 = vpop.f32.mrb[0].mxu0
        %1141 = vmatprep.mubr.bf16.mxu0 0
        %1142 = vmatmul.mubr.bf16.gmra.mrb[0].mxu0 %v1067
        %v1143 = vpop.f32.mrb[0].mxu0
        %v1144 = vadd.f32 %v1039, %v1143
        %v1145 = vpop.f32.mrb[0].mxu0
        %v1146 = vpop.f32.mrb[0].mxu0
        %v1147 = vadd.f32 %v1039, %v1146
        %v1148 = vpop.f32.mrb[0].mxu0
        %1149 = vmatprep.mubr.bf16.mxu0 0
        %1150 = vmatmul.mubr.bf16.gmra.mrb[0].mxu0 %v1070
        %v1151 = vpop.f32.mrb[0].mxu0
        %v1152 = vadd.f32 %v1039, %v1151
        %v1153 = vpop.f32.mrb[0].mxu0
        %v1154 = vpop.f32.mrb[0].mxu0
        %v1155 = vadd.f32 %v1039, %v1154
        %v1156 = vpop.f32.mrb[0].mxu0
        %1157 = vmatprep.mubr.bf16.mxu0 0
        %1158 = vmatmul.mubr.bf16.gmra.mrb[0].mxu0 %v1073
        %v1159 = vpop.f32.mrb[0].mxu0
        %v1160 = vadd.f32 %v1039, %v1159
        %v1161 = vpop.f32.mrb[0].mxu0
        %v1162 = vpop.f32.mrb[0].mxu0
        %v1163 = vadd.f32 %v1039, %v1162
        %v1164 = vpop.f32.mrb[0].mxu0
        %1165 = vmatprep.mubr.bf16.mxu0 0
        %1166 = vmatmul.mubr.bf16.gmra.mrb[0].mxu0 %v1076
        %v1167 = vpop.f32.mrb[0].mxu0
        %v1168 = vadd.f32 %v1039, %v1167
        %v1169 = vpop.f32.mrb[0].mxu0
        %v1170 = vpop.f32.mrb[0].mxu0
        %v1171 = vadd.f32 %v1039, %v1170
        %v1172 = vpop.f32.mrb[0].mxu0
        %1173 = vmatprep.mubr.bf16.mxu0 0
        %1174 = vmatmul.mubr.bf16.gmra.mrb[0].mxu0 %v1079
        %v1175 = vpop.f32.mrb[0].mxu0
        %v1176 = vadd.f32 %v1039, %v1175
        %v1177 = vpop.f32.mrb[0].mxu0
        %v1178 = vpop.f32.mrb[0].mxu0
        %v1179 = vadd.f32 %v1039, %v1178
        %v1180 = vpop.f32.mrb[0].mxu0
        %1181 = vdwg.mxu0
        %1182 = vxpose.xlu0.b32.start [1/16] %v1120, 128
        %1183 = vxpose.xlu0.b32.cont [2/16] %v1123, 128
        %1184 = vxpose.xlu0.b32.cont [3/16] %v1128, 128
        %1185 = vxpose.xlu0.b32.cont [4/16] %v1131, 128
        %1186 = vxpose.xlu0.b32.cont [5/16] %v1136, 128
        %1187 = vxpose.xlu0.b32.cont [6/16] %v1139, 128
        %1188 = vxpose.xlu0.b32.cont [7/16] %v1144, 128
        %1189 = vxpose.xlu0.b32.cont [8/16] %v1147, 128
        %1190 = vxpose.xlu0.b32.cont [9/16] %v1152, 128
        %1191 = vxpose.xlu0.b32.cont [10/16] %v1155, 128
        %1192 = vxpose.xlu0.b32.cont [11/16] %v1160, 128
        %1193 = vxpose.xlu0.b32.cont [12/16] %v1163, 128
        %1194 = vxpose.xlu0.b32.cont [13/16] %v1168, 128
        %1195 = vxpose.xlu0.b32.cont [14/16] %v1171, 128
        %1196 = vxpose.xlu0.b32.cont [15/16] %v1176, 128
        %1197 = vxpose.xlu0.b32.end [16/16] %v1179, 128
        %v1198 = vpop.trf.xlu0
        %v1199 = vpop.trf.xlu0
        %v1200 = vpop.trf.xlu0
        %v1201 = vpop.trf.xlu0
        %v1202 = vpop.trf.xlu0
        %v1203 = vpop.trf.xlu0
        %v1204 = vpop.trf.xlu0
        %v1205 = vpop.trf.xlu0
        %v1206 = vpop.trf.xlu0
        %v1207 = vpop.trf.xlu0
        %v1208 = vpop.trf.xlu0
        %v1209 = vpop.trf.xlu0
        %v1210 = vpop.trf.xlu0
        %v1211 = vpop.trf.xlu0
        %v1212 = vpop.trf.xlu0
        %v1213 = vpop.trf.xlu0
        %1214 = vst [vmem:[%s231] sm:$0xff] %v1198
        %s1215 = sand.u32 %s151, 1
        %s1216 = scalar_lea.sflag [#allocation5], %s1215
        %s1217 = sand.u32 %s151, 1
        %s1218 = smul.addr %s1217, 8
        %s1219 = scalar_lea.vmem [#allocation4], %s1218
        // Predicated region
        $region45: #{tpu_custom_call.1} parent=39 // pred_check
          %p1220 = pneg %p161
        $region46: #{tpu_custom_call.1} parent=39 // pred_check_branch
          %1222 = sbr.rel (%p1220) target = $region48
        $region47: #{tpu_custom_call.1} parent=39 // pred_region
          %s1224 = ssub.s32 128, 128
          %1225 = vsyncadd %s1216, %s1224
          %s1226 = smul.addr %s23, 2
          %s1227 = sadd.s32 %s24, %s1226
          %s1228 = smul.addr %s1227, 128
          %s1229 = scalar_lea.hbm %s5, %s1228
          %s1231 = sshll.u32 %s1219, 4
          %s1232 = int_to_ptr.vmem [resolvable:$true] %s1231
          %1234 = dma.vmem_to_hbm [thread:$0]  %s1232, 128, %s1229, %s1216
        $region48: #{tpu_custom_call.1} parent=39 // pred_fallthru
          _
      $region40: #{tpu_custom_call.1} parent=5 // pred_fallthru
        _
      %p1235 = scmp.le.s32.totalorder 2, %s14
      // Predicated region
      $region49: #{tpu_custom_call.1} parent=5 // pred_check
        %p1236 = pneg %p1235
      $region50: #{tpu_custom_call.1} parent=5 // pred_check_branch
        %1238 = sbr.rel (%p1236) target = $region52
      $region51: #{tpu_custom_call.1} parent=5 // pred_region
        %s1239 = ssub.s32 %s14, 2
        // Predicated region
        $region53: #{tpu_custom_call.1} parent=51 // pred_check
          %p1240 = pneg %p167
        $region54: #{tpu_custom_call.1} parent=51 // pred_check_branch
          %1242 = sbr.rel (%p1240) target = $region56
        $region55: #{tpu_custom_call.1} parent=51 // pred_region
          %s1243 = sand.u32 %s152, 1
          %s1244 = scalar_lea.sflag [#allocation5], %s1243
          %s1245 = sand.u32 %s152, 1
          %s1246 = smul.addr %s1245, 8
          %s1247 = scalar_lea.vmem [#allocation4], %s1246
          %1248 = dma.done %s1244, 128
        $region56: #{tpu_custom_call.1} parent=51 // pred_fallthru
          _
      $region52: #{tpu_custom_call.1} parent=5 // pred_fallthru
        _
    $region6: #{tpu_custom_call.1} parent=1 // loop_footer
      %s18 = sadd.s32 1, %s14
    $region7: #{tpu_custom_call.1} parent=1 // loop_footer_branch
      %13 = sbr.rel target = $region3
    $region8: #{tpu_custom_call.1} parent=1 // loop_exit
      _
    %1249 = vsyncpa [#allocation5], 1
    %s1250 = scalar_lea.sflag [#allocation5], 1
    %1251 = vsyncpa %s1250, 1

</llo_original>
